<compile_context>
chip_gen: v7x
topology: tpu7x:2x2x1
jax: 0.10.0
libtpu: 0.0.40
codegen_flags: <defaults>
</compile_context>

<pallas_src>
import jax
import jax.numpy as jnp
from jax.experimental import pallas as pl
from jax.experimental.pallas import tpu as pltpu

# ---- config (small, consistent with the PyTorch module) ----
BATCH = 2
HIDDEN = 32
ATTR_SIZE = 16
NUM_ATTR = 4
OUTPUT_SIZE = 40
NUM_LAYERS = 2


def attn_decoder_decode_kernel(
    # scalar prefetch
    tok_ref,            # SMEM (T, B) int32 token ids
    # inputs (VMEM-resident, constant block index -> DMA'd once)
    emb_ref,            # (V, 1, H)
    wxh_ref,            # (L, 2H, 4H)  rows = [x ; h_prev], gate order [i, f, g, o]
    b_ref,              # (L, 1, 4H)   pre-summed b_ih + b_hh
    h0_ref, c0_ref,     # (L, B, H)
    attrs_ref,          # (B, N, A)
    attn_wh_ref,        # (1, H)
    attn_wa_ref,        # (1, 1, A)
    attn_b_ref,         # (1, 1)
    attn_out_wh_ref,    # (H, H)
    attn_out_wa_ref,    # (A, H)
    attn_out_b_ref,     # (1, H)
    out_w_ref,          # (H, V)
    out_b_ref,          # (1, V)
    # outputs
    logp_ref,           # (1, B, V) block of (T, B, V)
    h_out_ref,          # (L, B, H)
    c_out_ref,          # (L, B, H)
    attn_wt_ref,        # (1, B, N) block of (T, B, N)
    # scratch (persists across the T grid)
    h_s, c_s,           # VMEM (L, B, H) carried recurrent state
):
    t = pl.program_id(0)
    T = pl.num_programs(0)
    L, B, H = h_s.shape
    f32 = jnp.float32

    # ---- initialize carried state from the provided hidden on the first step ----
    @pl.when(t == 0)
    def _():
        h_s[...] = h0_ref[...]
        c_s[...] = c0_ref[...]

    # ---- embedding lookup: dynamic row gather (no one-hot matmul) ----
    rows = [emb_ref[tok_ref[t, b]] for b in range(B)]          # each (1, H)
    x = jnp.concatenate(rows, axis=0)                          # (B, H)

    # ---- multi-layer LSTM, single time step (seq_len == 1, batch_first) ----
    for l in range(L):
        h_prev = h_s[l]                                        # (B, H)
        c_prev = c_s[l]                                        # (B, H)
        xh = jnp.concatenate([x, h_prev], axis=-1)             # (B, 2H)
        gates = (jnp.dot(xh, wxh_ref[l], preferred_element_type=f32)
                 + b_ref[l])                                   # (B, 4H)
        # Full-width nonlinearities, then static lane slices. Exact sigmoid:
        # approx reciprocal here would drift the recurrent state across steps.
        sig = 1.0 / (1.0 + jnp.exp(-gates))
        tnh = jnp.tanh(gates)
        i_g = sig[:, 0 * H:1 * H]
        f_g = sig[:, 1 * H:2 * H]
        g_g = tnh[:, 2 * H:3 * H]
        o_g = sig[:, 3 * H:4 * H]
        c_new = f_g * c_prev + i_g * g_g
        h_new = o_g * jnp.tanh(c_new)
        h_s[l] = h_new
        c_s[l] = c_new
        x = h_new

    hid = x                                                    # (B, H) last-layer output
    attrs = attrs_ref[...]                                     # (B, N, A)

    # ---- attention energies (VPU multiply + reduce, MXU kept out of the chain) ----
    e_h = jnp.sum(hid * attn_wh_ref[...], axis=-1, keepdims=True)   # (B, 1)
    e_a = jnp.sum(attrs * attn_wa_ref[...], axis=-1)                # (B, N)
    e = jnp.tanh(e_h + e_a + attn_b_ref[...])                       # (B, N)

    m = jnp.max(e, axis=-1, keepdims=True)
    ex = jnp.exp(e - m)
    w = ex / jnp.sum(ex, axis=-1, keepdims=True)                    # exact softmax
    attn_wt_ref[0] = w

    # ---- context = attn_weights bmm attrs, as a VPU reduce ----
    context = jnp.sum(w[:, :, None] * attrs, axis=1)                # (B, A)

    # ---- attn_out with split weights (no lane-axis concat) + tanh ----
    out_h = jnp.tanh(
        jnp.dot(hid, attn_out_wh_ref[...], preferred_element_type=f32)
        + jnp.dot(context, attn_out_wa_ref[...], preferred_element_type=f32)
        + attn_out_b_ref[...])                                      # (B, H)

    # ---- output projection + log_softmax ----
    logits = (jnp.dot(out_h, out_w_ref[...], preferred_element_type=f32)
              + out_b_ref[...])                                     # (B, V)
    lmax = jnp.max(logits, axis=-1, keepdims=True)
    shifted = logits - lmax
    logz = jnp.log(jnp.sum(jnp.exp(shifted), axis=-1, keepdims=True))
    logp_ref[0] = shifted - logz

    # ---- write the final recurrent state back only once ----
    @pl.when(t == T - 1)
    def _():
        h_out_ref[...] = h_s[...]
        c_out_ref[...] = c_s[...]


def attn_decoder_decode(params, tokens, hidden, attrs):
    """Run T decode steps (teacher-forced tokens) in ONE pallas_call.

    tokens: (T, B) int32. Returns (log_probs (T,B,V), (h,c), attn_weights (T,B,N)).
    """
    h0, c0 = hidden
    T, B = tokens.shape
    L, _, H = h0.shape
    V = params["embedding"].shape[0]
    N, A = attrs.shape[1], attrs.shape[2]

    def const2(t, tok):
        return (0, 0)

    def const3(t, tok):
        return (0, 0, 0)

    in_specs = [
        pl.BlockSpec((V, 1, H), const3),            # embedding
        pl.BlockSpec((L, 2 * H, 4 * H), const3),    # stacked LSTM weights
        pl.BlockSpec((L, 1, 4 * H), const3),        # pre-summed LSTM bias
        pl.BlockSpec((L, B, H), const3),            # h0
        pl.BlockSpec((L, B, H), const3),            # c0
        pl.BlockSpec((B, N, A), const3),            # attrs
        pl.BlockSpec((1, H), const2),               # attn_wh (row)
        pl.BlockSpec((1, 1, A), const3),            # attn_wa
        pl.BlockSpec((1, 1), const2),               # attn_b
        pl.BlockSpec((H, H), const2),               # attn_out_wh
        pl.BlockSpec((A, H), const2),               # attn_out_wa
        pl.BlockSpec((1, H), const2),               # attn_out_b
        pl.BlockSpec((H, V), const2),               # out_w
        pl.BlockSpec((1, V), const2),               # out_b
    ]
    out_specs = (
        pl.BlockSpec((1, B, V), lambda t, tok: (t, 0, 0)),   # log-probs per step
        pl.BlockSpec((L, B, H), const3),                     # final h
        pl.BlockSpec((L, B, H), const3),                     # final c
        pl.BlockSpec((1, B, N), lambda t, tok: (t, 0, 0)),   # attn weights per step
    )
    out_shapes = (
        jax.ShapeDtypeStruct((T, B, V), jnp.float32),
        jax.ShapeDtypeStruct((L, B, H), jnp.float32),
        jax.ShapeDtypeStruct((L, B, H), jnp.float32),
        jax.ShapeDtypeStruct((T, B, N), jnp.float32),
    )

    grid_spec = pltpu.PrefetchScalarGridSpec(
        num_scalar_prefetch=1,
        grid=(T,),
        in_specs=in_specs,
        out_specs=out_specs,
        scratch_shapes=[pltpu.VMEM((L, B, H), jnp.float32),   # carried h
                        pltpu.VMEM((L, B, H), jnp.float32)],  # carried c
    )

    logp, h_out, c_out, attn_wt = pl.pallas_call(
        attn_decoder_decode_kernel,
        out_shape=out_shapes,
        grid_spec=grid_spec,
        compiler_params=pltpu.CompilerParams(
            dimension_semantics=("arbitrary",)),   # T axis is serial
    )(
        tokens.astype(jnp.int32),
        params["embedding"],
        params["w_xh_t"], params["b"],
        h0.astype(jnp.float32), c0.astype(jnp.float32), attrs.astype(jnp.float32),
        params["attn_wh"], params["attn_wa"], params["attn_b"],
        params["attn_out_wh_t"], params["attn_out_wa_t"], params["attn_out_b"],
        params["out_w_t"], params["out_b"],
    )
    return logp, (h_out, c_out), attn_wt


def attn_decoder_forward(params, input_token, hidden, attrs):
    """Single-step forward matching PyTorch AttnDecoder.forward semantics.

    input_token: (B, 1) int. Returns (log_probs (B,1,V), (h,c), attn_weights (B,1,N)).
    """
    B = input_token.shape[0]
    tokens = input_token.astype(jnp.int32).reshape(1, B)       # T = 1
    logp, (h, c), attn_wt = attn_decoder_decode(params, tokens, hidden, attrs)
    return (jnp.transpose(logp, (1, 0, 2)),     # (B, 1, V)
            (h, c),
            jnp.transpose(attn_wt, (1, 0, 2)))  # (B, 1, N)


def init_params(key):
    """All parameters ~ U(-0.08, 0.08) (matches init_hidden()); stored pre-transposed,
    LSTM ih/hh weights host-stacked, biases pre-summed, attn weights pre-split."""
    def u(k, shape):
        return jax.random.uniform(k, shape, jnp.float32, -0.08, 0.08)

    ks = jax.random.split(key, 11)
    H, A, V, L = HIDDEN, ATTR_SIZE, OUTPUT_SIZE, NUM_LAYERS
    w_ih_t = u(ks[1], (L, H, 4 * H))                  # (input, 4H), gate order [i,f,g,o]
    w_hh_t = u(ks[2], (L, H, 4 * H))
    b_ih = u(ks[3], (L, 1, 4 * H))
    b_hh = u(ks[4], (L, 1, 4 * H))
    attn_score_w_t = u(ks[5], (H + A, 1))
    attn_out_w_t = u(ks[7], (H + A, H))
    return {
        "embedding":      u(ks[0], (V, H)).reshape(V, 1, H),        # gather-friendly
        "w_xh_t":         jnp.concatenate([w_ih_t, w_hh_t], axis=1),  # (L, 2H, 4H)
        "b":              b_ih + b_hh,                              # pre-summed LSTM bias
        "attn_wh":        attn_score_w_t[:H, 0].reshape(1, H),      # (1, H) row
        "attn_wa":        attn_score_w_t[H:, 0].reshape(1, 1, A),   # (1, 1, A)
        "attn_b":         u(ks[6], (1, 1)),                         # scalar bias
        "attn_out_wh_t":  attn_out_w_t[:H, :],                      # (H, H)
        "attn_out_wa_t":  attn_out_w_t[H:, :],                      # (A, H)
        "attn_out_b":     u(ks[8], (1, H)),
        "out_w_t":        u(ks[9], (H, V)),
        "out_b":          u(ks[10], (1, V)),
    }


if __name__ == "__main__":
    key = jax.random.PRNGKey(0)
    kp, kt, kh, kc, ka, kseq = jax.random.split(key, 6)
    params = init_params(kp)

    input_token = jax.random.randint(kt, (BATCH, 1), 0, OUTPUT_SIZE, dtype=jnp.int32)
    h0 = jax.random.uniform(kh, (NUM_LAYERS, BATCH, HIDDEN), jnp.float32, -0.1, 0.1)
    c0 = jax.random.uniform(kc, (NUM_LAYERS, BATCH, HIDDEN), jnp.float32, -0.1, 0.1)
    attrs = jax.random.uniform(ka, (BATCH, NUM_ATTR, ATTR_SIZE), jnp.float32, -1.0, 1.0)

    # ---- single-step forward (exact module interface) ----
    log_probs, (h1, c1), attn_weights = attn_decoder_forward(
        params, input_token, (h0, c0), attrs)
    jax.block_until_ready((log_probs, h1, c1, attn_weights))
    assert log_probs.shape == (BATCH, 1, OUTPUT_SIZE)
    assert h1.shape == (NUM_LAYERS, BATCH, HIDDEN)
    assert c1.shape == (NUM_LAYERS, BATCH, HIDDEN)
    assert attn_weights.shape == (BATCH, 1, NUM_ATTR)

    # ---- fused multi-step decode: T teacher-forced steps, one kernel launch ----
    T = 8
    tokens = jax.random.randint(kseq, (T, BATCH), 0, OUTPUT_SIZE, dtype=jnp.int32)
    logp_seq, (hT, cT), attn_seq = attn_decoder_decode(params, tokens, (h0, c0), attrs)
    jax.block_until_ready((logp_seq, hT, cT, attn_seq))
    assert logp_seq.shape == (T, BATCH, OUTPUT_SIZE)
    assert hT.shape == (NUM_LAYERS, BATCH, HIDDEN)
    assert cT.shape == (NUM_LAYERS, BATCH, HIDDEN)
    assert attn_seq.shape == (T, BATCH, NUM_ATTR)

    print("KERNEL_OK")
</pallas_src>

<mosaic_0001>
module attributes {stable_mosaic.version = 11 : i64} {
  func.func @attn_decoder_decode_kernel(%arg0: i32, %arg1: memref<1x2xi32, #tpu.memory_space<smem>>, %arg2: memref<40x1x32xf32, #tpu.memory_space<vmem>>, %arg3: memref<2x64x128xf32, #tpu.memory_space<vmem>>, %arg4: memref<2x1x128xf32, #tpu.memory_space<vmem>>, %arg5: memref<2x2x32xf32, #tpu.memory_space<vmem>>, %arg6: memref<2x2x32xf32, #tpu.memory_space<vmem>>, %arg7: memref<2x4x16xf32, #tpu.memory_space<vmem>>, %arg8: memref<1x32xf32, #tpu.memory_space<vmem>>, %arg9: memref<1x1x16xf32, #tpu.memory_space<vmem>>, %arg10: memref<1x1xf32, #tpu.memory_space<vmem>>, %arg11: memref<32x32xf32, #tpu.memory_space<vmem>>, %arg12: memref<16x32xf32, #tpu.memory_space<vmem>>, %arg13: memref<1x32xf32, #tpu.memory_space<vmem>>, %arg14: memref<32x40xf32, #tpu.memory_space<vmem>>, %arg15: memref<1x40xf32, #tpu.memory_space<vmem>>, %arg16: memref<1x2x40xf32, #tpu.memory_space<vmem>>, %arg17: memref<2x2x32xf32, #tpu.memory_space<vmem>>, %arg18: memref<2x2x32xf32, #tpu.memory_space<vmem>>, %arg19: memref<1x2x4xf32, #tpu.memory_space<vmem>>, %arg20: memref<2x2x32xf32, #tpu.memory_space<vmem>>, %arg21: memref<2x2x32xf32, #tpu.memory_space<vmem>>) attributes {dimension_semantics = [#tpu.dimension_semantics<arbitrary>], iteration_bounds = array<i64: 1>, scalar_prefetch = 1 : i64, scratch_operands = 2 : i64, tpu.core_type = #tpu.core_type<tc>, window_params = [{pipeline_mode = #tpu.pipeline_mode<synchronous>, transform_indices = @transform_0, window_bounds = array<i64: 40, 1, 32>}, {pipeline_mode = #tpu.pipeline_mode<synchronous>, transform_indices = @transform_1, window_bounds = array<i64: 2, 64, 128>}, {pipeline_mode = #tpu.pipeline_mode<synchronous>, transform_indices = @transform_2, window_bounds = array<i64: 2, 1, 128>}, {pipeline_mode = #tpu.pipeline_mode<synchronous>, transform_indices = @transform_3, window_bounds = array<i64: 2, 2, 32>}, {pipeline_mode = #tpu.pipeline_mode<synchronous>, transform_indices = @transform_4, window_bounds = array<i64: 2, 2, 32>}, {pipeline_mode = #tpu.pipeline_mode<synchronous>, transform_indices = @transform_5, window_bounds = array<i64: 2, 4, 16>}, {pipeline_mode = #tpu.pipeline_mode<synchronous>, transform_indices = @transform_6, window_bounds = array<i64: 1, 32>}, {pipeline_mode = #tpu.pipeline_mode<synchronous>, transform_indices = @transform_7, window_bounds = array<i64: 1, 1, 16>}, {pipeline_mode = #tpu.pipeline_mode<synchronous>, transform_indices = @transform_8, window_bounds = array<i64: 1, 1>}, {pipeline_mode = #tpu.pipeline_mode<synchronous>, transform_indices = @transform_9, window_bounds = array<i64: 32, 32>}, {pipeline_mode = #tpu.pipeline_mode<synchronous>, transform_indices = @transform_10, window_bounds = array<i64: 16, 32>}, {pipeline_mode = #tpu.pipeline_mode<synchronous>, transform_indices = @transform_11, window_bounds = array<i64: 1, 32>}, {pipeline_mode = #tpu.pipeline_mode<synchronous>, transform_indices = @transform_12, window_bounds = array<i64: 32, 40>}, {pipeline_mode = #tpu.pipeline_mode<synchronous>, transform_indices = @transform_13, window_bounds = array<i64: 1, 40>}, {transform_indices = @transform_14, window_bounds = array<i64: 1, 2, 40>}, {pipeline_mode = #tpu.pipeline_mode<synchronous>, transform_indices = @transform_15, window_bounds = array<i64: 2, 2, 32>}, {pipeline_mode = #tpu.pipeline_mode<synchronous>, transform_indices = @transform_16, window_bounds = array<i64: 2, 2, 32>}, {transform_indices = @transform_17, window_bounds = array<i64: 1, 2, 4>}]} {
    %c0_i32 = arith.constant 0 : i32
    %0 = arith.cmpi eq, %arg0, %c0_i32 : i32
    %1 = arith.extui %0 : i1 to i32
    %c0_i32_0 = arith.constant 0 : i32
    %2 = arith.cmpi ne, %1, %c0_i32_0 : i32
    scf.if %2 {
      %c0_86 = arith.constant 0 : index
      %c0_87 = arith.constant 0 : index
      %c0_88 = arith.constant 0 : index
      %146 = vector.load %arg5[%c0_86, %c0_87, %c0_88] : memref<2x2x32xf32, #tpu.memory_space<vmem>>, vector<2x2x32xf32>
      %c0_89 = arith.constant 0 : index
      %c0_90 = arith.constant 0 : index
      %c0_91 = arith.constant 0 : index
      %147 = vector.load %arg20[%c0_89, %c0_90, %c0_91] : memref<2x2x32xf32, #tpu.memory_space<vmem>>, vector<2x2x32xf32>
      tpu.vector_store %arg20[%c0_89, %c0_90, %c0_91], %146 {strides = array<i32>} : memref<2x2x32xf32, #tpu.memory_space<vmem>>, vector<2x2x32xf32>,
      %c0_92 = arith.constant 0 : index
      %c0_93 = arith.constant 0 : index
      %c0_94 = arith.constant 0 : index
      %148 = vector.load %arg6[%c0_92, %c0_93, %c0_94] : memref<2x2x32xf32, #tpu.memory_space<vmem>>, vector<2x2x32xf32>
      %c0_95 = arith.constant 0 : index
      %c0_96 = arith.constant 0 : index
      %c0_97 = arith.constant 0 : index
      %149 = vector.load %arg21[%c0_95, %c0_96, %c0_97] : memref<2x2x32xf32, #tpu.memory_space<vmem>>, vector<2x2x32xf32>
      tpu.vector_store %arg21[%c0_95, %c0_96, %c0_97], %148 {strides = array<i32>} : memref<2x2x32xf32, #tpu.memory_space<vmem>>, vector<2x2x32xf32>,
    } else {
    }
    %3 = arith.index_cast %arg0 : i32 to index
    %c0 = arith.constant 0 : index
    %4 = memref.load %arg1[%3, %c0] : memref<1x2xi32, #tpu.memory_space<smem>>
    %5 = arith.index_cast %4 : i32 to index
    %c0_1 = arith.constant 0 : index
    %c0_2 = arith.constant 0 : index
    %6 = vector.load %arg2[%5, %c0_1, %c0_2] : memref<40x1x32xf32, #tpu.memory_space<vmem>>, vector<1x1x32xf32>
    %7 = vector.shape_cast %6 : vector<1x1x32xf32> to vector<1x32xf32>
    %8 = arith.index_cast %arg0 : i32 to index
    %c1 = arith.constant 1 : index
    %9 = memref.load %arg1[%8, %c1] : memref<1x2xi32, #tpu.memory_space<smem>>
    %10 = arith.index_cast %9 : i32 to index
    %c0_3 = arith.constant 0 : index
    %c0_4 = arith.constant 0 : index
    %11 = vector.load %arg2[%10, %c0_3, %c0_4] : memref<40x1x32xf32, #tpu.memory_space<vmem>>, vector<1x1x32xf32>
    %12 = vector.shape_cast %11 : vector<1x1x32xf32> to vector<1x32xf32>
    %13 = tpu.concatenate %7, %12 in 0 : vector<1x32xf32>, vector<1x32xf32> -> vector<2x32xf32>
    %c0_5 = arith.constant 0 : index
    %c0_6 = arith.constant 0 : index
    %c0_7 = arith.constant 0 : index
    %14 = vector.load %arg20[%c0_5, %c0_6, %c0_7] : memref<2x2x32xf32, #tpu.memory_space<vmem>>, vector<1x2x32xf32>
    %15 = vector.shape_cast %14 : vector<1x2x32xf32> to vector<2x32xf32>
    %c0_8 = arith.constant 0 : index
    %c0_9 = arith.constant 0 : index
    %c0_10 = arith.constant 0 : index
    %16 = vector.load %arg21[%c0_8, %c0_9, %c0_10] : memref<2x2x32xf32, #tpu.memory_space<vmem>>, vector<1x2x32xf32>
    %17 = vector.shape_cast %16 : vector<1x2x32xf32> to vector<2x32xf32>
    %18 = tpu.concatenate %13, %15 in 1 : vector<2x32xf32>, vector<2x32xf32> -> vector<2x64xf32>
    %c0_11 = arith.constant 0 : index
    %c0_12 = arith.constant 0 : index
    %c0_13 = arith.constant 0 : index
    %19 = vector.load %arg3[%c0_11, %c0_12, %c0_13] : memref<2x64x128xf32, #tpu.memory_space<vmem>>, vector<1x64x128xf32>
    %20 = vector.shape_cast %19 : vector<1x64x128xf32> to vector<64x128xf32>
    %cst = arith.constant dense<0.000000e+00> : vector<2x128xf32>
    %21 = tpu.matmul %18, %20, %cst {dimension_numbers = #tpu.dot_dimension_numbers<[1], [0], [0], [1], [0, 0, 1, 1], [], []>} : vector<2x64xf32>, vector<64x128xf32>, vector<2x128xf32> -> vector<2x128xf32>
    %c0_14 = arith.constant 0 : index
    %c0_15 = arith.constant 0 : index
    %c0_16 = arith.constant 0 : index
    %22 = vector.load %arg4[%c0_14, %c0_15, %c0_16] : memref<2x1x128xf32, #tpu.memory_space<vmem>>, vector<1x1x128xf32>
    %23 = vector.shape_cast %22 : vector<1x1x128xf32> to vector<1x128xf32>
    %24 = vector.broadcast %23 : vector<1x128xf32> to vector<2x128xf32>
    %25 = arith.addf %21, %24 : vector<2x128xf32>
    %cst_17 = arith.constant 0.000000e+00 : f32
    %26 = vector.broadcast %cst_17 : f32 to vector<2x128xf32>
    %27 = arith.subf %26, %25 : vector<2x128xf32>
    %28 = math.exp %27 : vector<2x128xf32>
    %cst_18 = arith.constant 1.000000e+00 : f32
    %29 = vector.broadcast %cst_18 : f32 to vector<2x128xf32>
    %30 = arith.addf %29, %28 : vector<2x128xf32>
    %cst_19 = arith.constant 1.000000e+00 : f32
    %31 = vector.broadcast %cst_19 : f32 to vector<2x128xf32>
    %32 = arith.divf %31, %30 : vector<2x128xf32>
    %33 = math.tanh %25 : vector<2x128xf32>
    %34 = vector.extract_strided_slice %32 {offsets = [0, 0], sizes = [2, 32], strides = [1, 1]} : vector<2x128xf32> to vector<2x32xf32>
    %35 = vector.extract_strided_slice %32 {offsets = [0, 32], sizes = [2, 32], strides = [1, 1]} : vector<2x128xf32> to vector<2x32xf32>
    %36 = vector.extract_strided_slice %33 {offsets = [0, 64], sizes = [2, 32], strides = [1, 1]} : vector<2x128xf32> to vector<2x32xf32>
    %37 = vector.extract_strided_slice %32 {offsets = [0, 96], sizes = [2, 32], strides = [1, 1]} : vector<2x128xf32> to vector<2x32xf32>
    %38 = arith.mulf %35, %17 : vector<2x32xf32>
    %39 = arith.mulf %34, %36 : vector<2x32xf32>
    %40 = arith.addf %38, %39 : vector<2x32xf32>
    %41 = math.tanh %40 : vector<2x32xf32>
    %42 = arith.mulf %37, %41 : vector<2x32xf32>
    %c0_20 = arith.constant 0 : index
    %c0_21 = arith.constant 0 : index
    %c0_22 = arith.constant 0 : index
    %43 = vector.load %arg20[%c0_20, %c0_21, %c0_22] : memref<2x2x32xf32, #tpu.memory_space<vmem>>, vector<1x2x32xf32>
    %44 = vector.shape_cast %43 : vector<1x2x32xf32> to vector<2x32xf32>
    %45 = vector.shape_cast %42 : vector<2x32xf32> to vector<1x2x32xf32>
    tpu.vector_store %arg20[%c0_20, %c0_21, %c0_22], %45 {strides = array<i32>} : memref<2x2x32xf32, #tpu.memory_space<vmem>>, vector<1x2x32xf32>,
    %c0_23 = arith.constant 0 : index
    %c0_24 = arith.constant 0 : index
    %c0_25 = arith.constant 0 : index
    %46 = vector.load %arg21[%c0_23, %c0_24, %c0_25] : memref<2x2x32xf32, #tpu.memory_space<vmem>>, vector<1x2x32xf32>
    %47 = vector.shape_cast %46 : vector<1x2x32xf32> to vector<2x32xf32>
    %48 = vector.shape_cast %40 : vector<2x32xf32> to vector<1x2x32xf32>
    tpu.vector_store %arg21[%c0_23, %c0_24, %c0_25], %48 {strides = array<i32>} : memref<2x2x32xf32, #tpu.memory_space<vmem>>, vector<1x2x32xf32>,
    %c1_26 = arith.constant 1 : index
    %c0_27 = arith.constant 0 : index
    %c0_28 = arith.constant 0 : index
    %49 = vector.load %arg20[%c1_26, %c0_27, %c0_28] : memref<2x2x32xf32, #tpu.memory_space<vmem>>, vector<1x2x32xf32>
    %50 = vector.shape_cast %49 : vector<1x2x32xf32> to vector<2x32xf32>
    %c1_29 = arith.constant 1 : index
    %c0_30 = arith.constant 0 : index
    %c0_31 = arith.constant 0 : index
    %51 = vector.load %arg21[%c1_29, %c0_30, %c0_31] : memref<2x2x32xf32, #tpu.memory_space<vmem>>, vector<1x2x32xf32>
    %52 = vector.shape_cast %51 : vector<1x2x32xf32> to vector<2x32xf32>
    %53 = tpu.concatenate %42, %50 in 1 : vector<2x32xf32>, vector<2x32xf32> -> vector<2x64xf32>
    %c1_32 = arith.constant 1 : index
    %c0_33 = arith.constant 0 : index
    %c0_34 = arith.constant 0 : index
    %54 = vector.load %arg3[%c1_32, %c0_33, %c0_34] : memref<2x64x128xf32, #tpu.memory_space<vmem>>, vector<1x64x128xf32>
    %55 = vector.shape_cast %54 : vector<1x64x128xf32> to vector<64x128xf32>
    %cst_35 = arith.constant dense<0.000000e+00> : vector<2x128xf32>
    %56 = tpu.matmul %53, %55, %cst_35 {dimension_numbers = #tpu.dot_dimension_numbers<[1], [0], [0], [1], [0, 0, 1, 1], [], []>} : vector<2x64xf32>, vector<64x128xf32>, vector<2x128xf32> -> vector<2x128xf32>
    %c1_36 = arith.constant 1 : index
    %c0_37 = arith.constant 0 : index
    %c0_38 = arith.constant 0 : index
    %57 = vector.load %arg4[%c1_36, %c0_37, %c0_38] : memref<2x1x128xf32, #tpu.memory_space<vmem>>, vector<1x1x128xf32>
    %58 = vector.shape_cast %57 : vector<1x1x128xf32> to vector<1x128xf32>
    %59 = vector.broadcast %58 : vector<1x128xf32> to vector<2x128xf32>
    %60 = arith.addf %56, %59 : vector<2x128xf32>
    %cst_39 = arith.constant 0.000000e+00 : f32
    %61 = vector.broadcast %cst_39 : f32 to vector<2x128xf32>
    %62 = arith.subf %61, %60 : vector<2x128xf32>
    %63 = math.exp %62 : vector<2x128xf32>
    %cst_40 = arith.constant 1.000000e+00 : f32
    %64 = vector.broadcast %cst_40 : f32 to vector<2x128xf32>
    %65 = arith.addf %64, %63 : vector<2x128xf32>
    %cst_41 = arith.constant 1.000000e+00 : f32
    %66 = vector.broadcast %cst_41 : f32 to vector<2x128xf32>
    %67 = arith.divf %66, %65 : vector<2x128xf32>
    %68 = math.tanh %60 : vector<2x128xf32>
    %69 = vector.extract_strided_slice %67 {offsets = [0, 0], sizes = [2, 32], strides = [1, 1]} : vector<2x128xf32> to vector<2x32xf32>
    %70 = vector.extract_strided_slice %67 {offsets = [0, 32], sizes = [2, 32], strides = [1, 1]} : vector<2x128xf32> to vector<2x32xf32>
    %71 = vector.extract_strided_slice %68 {offsets = [0, 64], sizes = [2, 32], strides = [1, 1]} : vector<2x128xf32> to vector<2x32xf32>
    %72 = vector.extract_strided_slice %67 {offsets = [0, 96], sizes = [2, 32], strides = [1, 1]} : vector<2x128xf32> to vector<2x32xf32>
    %73 = arith.mulf %70, %52 : vector<2x32xf32>
    %74 = arith.mulf %69, %71 : vector<2x32xf32>
    %75 = arith.addf %73, %74 : vector<2x32xf32>
    %76 = math.tanh %75 : vector<2x32xf32>
    %77 = arith.mulf %72, %76 : vector<2x32xf32>
    %c1_42 = arith.constant 1 : index
    %c0_43 = arith.constant 0 : index
    %c0_44 = arith.constant 0 : index
    %78 = vector.load %arg20[%c1_42, %c0_43, %c0_44] : memref<2x2x32xf32, #tpu.memory_space<vmem>>, vector<1x2x32xf32>
    %79 = vector.shape_cast %78 : vector<1x2x32xf32> to vector<2x32xf32>
    %80 = vector.shape_cast %77 : vector<2x32xf32> to vector<1x2x32xf32>
    tpu.vector_store %arg20[%c1_42, %c0_43, %c0_44], %80 {strides = array<i32>} : memref<2x2x32xf32, #tpu.memory_space<vmem>>, vector<1x2x32xf32>,
    %c1_45 = arith.constant 1 : index
    %c0_46 = arith.constant 0 : index
    %c0_47 = arith.constant 0 : index
    %81 = vector.load %arg21[%c1_45, %c0_46, %c0_47] : memref<2x2x32xf32, #tpu.memory_space<vmem>>, vector<1x2x32xf32>
    %82 = vector.shape_cast %81 : vector<1x2x32xf32> to vector<2x32xf32>
    %83 = vector.shape_cast %75 : vector<2x32xf32> to vector<1x2x32xf32>
    tpu.vector_store %arg21[%c1_45, %c0_46, %c0_47], %83 {strides = array<i32>} : memref<2x2x32xf32, #tpu.memory_space<vmem>>, vector<1x2x32xf32>,
    %c0_48 = arith.constant 0 : index
    %c0_49 = arith.constant 0 : index
    %c0_50 = arith.constant 0 : index
    %84 = vector.load %arg7[%c0_48, %c0_49, %c0_50] : memref<2x4x16xf32, #tpu.memory_space<vmem>>, vector<2x4x16xf32>
    %c0_51 = arith.constant 0 : index
    %c0_52 = arith.constant 0 : index
    %85 = vector.load %arg8[%c0_51, %c0_52] : memref<1x32xf32, #tpu.memory_space<vmem>>, vector<1x32xf32>
    %86 = vector.broadcast %85 : vector<1x32xf32> to vector<2x32xf32>
    %87 = arith.mulf %77, %86 : vector<2x32xf32>
    %cst_53 = arith.constant dense<0.000000e+00> : vector<2xf32>
    %88 = vector.multi_reduction <add>, %87, %cst_53 [1] : vector<2x32xf32> to vector<2xf32>
    %89 = vector.shape_cast %88 : vector<2xf32> to vector<2x1xf32>
    %c0_54 = arith.constant 0 : index
    %c0_55 = arith.constant 0 : index
    %c0_56 = arith.constant 0 : index
    %90 = vector.load %arg9[%c0_54, %c0_55, %c0_56] : memref<1x1x16xf32, #tpu.memory_space<vmem>>, vector<1x1x16xf32>
    %91 = vector.broadcast %90 : vector<1x1x16xf32> to vector<2x4x16xf32>
    %92 = arith.mulf %84, %91 : vector<2x4x16xf32>
    %cst_57 = arith.constant dense<0.000000e+00> : vector<2x4xf32>
    %93 = vector.multi_reduction <add>, %92, %cst_57 [2] : vector<2x4x16xf32> to vector<2x4xf32>
    %94 = vector.broadcast %89 : vector<2x1xf32> to vector<2x4xf32>
    %95 = arith.addf %94, %93 : vector<2x4xf32>
    %c0_58 = arith.constant 0 : index
    %c0_59 = arith.constant 0 : index
    %96 = vector.load %arg10[%c0_58, %c0_59] : memref<1x1xf32, #tpu.memory_space<vmem>>, vector<1x1xf32>
    %97 = vector.broadcast %96 : vector<1x1xf32> to vector<2x4xf32>
    %98 = arith.addf %95, %97 : vector<2x4xf32>
    %99 = math.tanh %98 : vector<2x4xf32>
    %cst_60 = arith.constant dense<0xFF800000> : vector<2xf32>
    %100 = vector.multi_reduction <maximumf>, %99, %cst_60 [1] : vector<2x4xf32> to vector<2xf32>
    %101 = vector.shape_cast %100 : vector<2xf32> to vector<2x1xf32>
    %102 = vector.broadcast %101 : vector<2x1xf32> to vector<2x4xf32>
    %103 = arith.subf %99, %102 : vector<2x4xf32>
    %104 = math.exp %103 : vector<2x4xf32>
    %cst_61 = arith.constant dense<0.000000e+00> : vector<2xf32>
    %105 = vector.multi_reduction <add>, %104, %cst_61 [1] : vector<2x4xf32> to vector<2xf32>
    %106 = vector.shape_cast %105 : vector<2xf32> to vector<2x1xf32>
    %107 = vector.broadcast %106 : vector<2x1xf32> to vector<2x4xf32>
    %108 = arith.divf %104, %107 : vector<2x4xf32>
    %c0_62 = arith.constant 0 : index
    %c0_63 = arith.constant 0 : index
    %c0_64 = arith.constant 0 : index
    %109 = vector.load %arg19[%c0_62, %c0_63, %c0_64] : memref<1x2x4xf32, #tpu.memory_space<vmem>>, vector<1x2x4xf32>
    %110 = vector.shape_cast %109 : vector<1x2x4xf32> to vector<2x4xf32>
    %111 = vector.shape_cast %108 : vector<2x4xf32> to vector<1x2x4xf32>
    tpu.vector_store %arg19[%c0_62, %c0_63, %c0_64], %111 {strides = array<i32>} : memref<1x2x4xf32, #tpu.memory_space<vmem>>, vector<1x2x4xf32>,
    %112 = vector.shape_cast %108 : vector<2x4xf32> to vector<2x4x1xf32>
    %113 = vector.broadcast %112 : vector<2x4x1xf32> to vector<2x4x16xf32>
    %114 = arith.mulf %113, %84 : vector<2x4x16xf32>
    %cst_65 = arith.constant dense<0.000000e+00> : vector<2x16xf32>
    %115 = vector.multi_reduction <add>, %114, %cst_65 [1] : vector<2x4x16xf32> to vector<2x16xf32>
    %c0_66 = arith.constant 0 : index
    %c0_67 = arith.constant 0 : index
    %116 = vector.load %arg11[%c0_66, %c0_67] : memref<32x32xf32, #tpu.memory_space<vmem>>, vector<32x32xf32>
    %cst_68 = arith.constant dense<0.000000e+00> : vector<2x32xf32>
    %117 = tpu.matmul %77, %116, %cst_68 {dimension_numbers = #tpu.dot_dimension_numbers<[1], [0], [0], [1], [0, 0, 1, 1], [], []>} : vector<2x32xf32>, vector<32x32xf32>, vector<2x32xf32> -> vector<2x32xf32>
    %c0_69 = arith.constant 0 : index
    %c0_70 = arith.constant 0 : index
    %118 = vector.load %arg12[%c0_69, %c0_70] : memref<16x32xf32, #tpu.memory_space<vmem>>, vector<16x32xf32>
    %cst_71 = arith.constant dense<0.000000e+00> : vector<2x32xf32>
    %119 = tpu.matmul %115, %118, %cst_71 {dimension_numbers = #tpu.dot_dimension_numbers<[1], [0], [0], [1], [0, 0, 1, 1], [], []>} : vector<2x16xf32>, vector<16x32xf32>, vector<2x32xf32> -> vector<2x32xf32>
    %120 = arith.addf %117, %119 : vector<2x32xf32>
    %c0_72 = arith.constant 0 : index
    %c0_73 = arith.constant 0 : index
    %121 = vector.load %arg13[%c0_72, %c0_73] : memref<1x32xf32, #tpu.memory_space<vmem>>, vector<1x32xf32>
    %122 = vector.broadcast %121 : vector<1x32xf32> to vector<2x32xf32>
    %123 = arith.addf %120, %122 : vector<2x32xf32>
    %124 = math.tanh %123 : vector<2x32xf32>
    %c0_74 = arith.constant 0 : index
    %c0_75 = arith.constant 0 : index
    %125 = vector.load %arg14[%c0_74, %c0_75] : memref<32x40xf32, #tpu.memory_space<vmem>>, vector<32x40xf32>
    %cst_76 = arith.constant dense<0.000000e+00> : vector<2x40xf32>
    %126 = tpu.matmul %124, %125, %cst_76 {dimension_numbers = #tpu.dot_dimension_numbers<[1], [0], [0], [1], [0, 0, 1, 1], [], []>} : vector<2x32xf32>, vector<32x40xf32>, vector<2x40xf32> -> vector<2x40xf32>
    %c0_77 = arith.constant 0 : index
    %c0_78 = arith.constant 0 : index
    %127 = vector.load %arg15[%c0_77, %c0_78] : memref<1x40xf32, #tpu.memory_space<vmem>>, vector<1x40xf32>
    %128 = vector.broadcast %127 : vector<1x40xf32> to vector<2x40xf32>
    %129 = arith.addf %126, %128 : vector<2x40xf32>
    %cst_79 = arith.constant dense<0xFF800000> : vector<2xf32>
    %130 = vector.multi_reduction <maximumf>, %129, %cst_79 [1] : vector<2x40xf32> to vector<2xf32>
    %131 = vector.shape_cast %130 : vector<2xf32> to vector<2x1xf32>
    %132 = vector.broadcast %131 : vector<2x1xf32> to vector<2x40xf32>
    %133 = arith.subf %129, %132 : vector<2x40xf32>
    %134 = math.exp %133 : vector<2x40xf32>
    %cst_80 = arith.constant dense<0.000000e+00> : vector<2xf32>
    %135 = vector.multi_reduction <add>, %134, %cst_80 [1] : vector<2x40xf32> to vector<2xf32>
    %136 = vector.shape_cast %135 : vector<2xf32> to vector<2x1xf32>
    %137 = math.log %136 : vector<2x1xf32>
    %138 = vector.broadcast %137 : vector<2x1xf32> to vector<2x40xf32>
    %139 = arith.subf %133, %138 : vector<2x40xf32>
    %c0_81 = arith.constant 0 : index
    %c0_82 = arith.constant 0 : index
    %c0_83 = arith.constant 0 : index
    %140 = vector.load %arg16[%c0_81, %c0_82, %c0_83] : memref<1x2x40xf32, #tpu.memory_space<vmem>>, vector<1x2x40xf32>
    %141 = vector.shape_cast %140 : vector<1x2x40xf32> to vector<2x40xf32>
    %142 = vector.shape_cast %139 : vector<2x40xf32> to vector<1x2x40xf32>
    tpu.vector_store %arg16[%c0_81, %c0_82, %c0_83], %142 {strides = array<i32>} : memref<1x2x40xf32, #tpu.memory_space<vmem>>, vector<1x2x40xf32>,
    %c0_i32_84 = arith.constant 0 : i32
    %143 = arith.cmpi eq, %arg0, %c0_i32_84 : i32
    %144 = arith.extui %143 : i1 to i32
    %c0_i32_85 = arith.constant 0 : i32
    %145 = arith.cmpi ne, %144, %c0_i32_85 : i32
    scf.if %145 {
      %c0_86 = arith.constant 0 : index
      %c0_87 = arith.constant 0 : index
      %c0_88 = arith.constant 0 : index
      %146 = vector.load %arg20[%c0_86, %c0_87, %c0_88] : memref<2x2x32xf32, #tpu.memory_space<vmem>>, vector<2x2x32xf32>
      %c0_89 = arith.constant 0 : index
      %c0_90 = arith.constant 0 : index
      %c0_91 = arith.constant 0 : index
      %147 = vector.load %arg17[%c0_89, %c0_90, %c0_91] : memref<2x2x32xf32, #tpu.memory_space<vmem>>, vector<2x2x32xf32>
      tpu.vector_store %arg17[%c0_89, %c0_90, %c0_91], %146 {strides = array<i32>} : memref<2x2x32xf32, #tpu.memory_space<vmem>>, vector<2x2x32xf32>,
      %c0_92 = arith.constant 0 : index
      %c0_93 = arith.constant 0 : index
      %c0_94 = arith.constant 0 : index
      %148 = vector.load %arg21[%c0_92, %c0_93, %c0_94] : memref<2x2x32xf32, #tpu.memory_space<vmem>>, vector<2x2x32xf32>
      %c0_95 = arith.constant 0 : index
      %c0_96 = arith.constant 0 : index
      %c0_97 = arith.constant 0 : index
      %149 = vector.load %arg18[%c0_95, %c0_96, %c0_97] : memref<2x2x32xf32, #tpu.memory_space<vmem>>, vector<2x2x32xf32>
      tpu.vector_store %arg18[%c0_95, %c0_96, %c0_97], %148 {strides = array<i32>} : memref<2x2x32xf32, #tpu.memory_space<vmem>>, vector<2x2x32xf32>,
    } else {
    }
    return
  }
  func.func @transform_0(%arg0: i32, %arg1: memref<1x2xi32, #tpu.memory_space<smem>>) -> (i32, i32, i32) {
    %c0_i32 = arith.constant 0 : i32
    %c0_i32_0 = arith.constant 0 : i32
    %c0_i32_1 = arith.constant 0 : i32
    %c0_i32_2 = arith.constant 0 : i32
    return %c0_i32, %c0_i32_0, %c0_i32_1 : i32, i32, i32
  }
  func.func @transform_1(%arg0: i32, %arg1: memref<1x2xi32, #tpu.memory_space<smem>>) -> (i32, i32, i32) {
    %c0_i32 = arith.constant 0 : i32
    %c0_i32_0 = arith.constant 0 : i32
    %c0_i32_1 = arith.constant 0 : i32
    %c0_i32_2 = arith.constant 0 : i32
    return %c0_i32, %c0_i32_0, %c0_i32_1 : i32, i32, i32
  }
  func.func @transform_2(%arg0: i32, %arg1: memref<1x2xi32, #tpu.memory_space<smem>>) -> (i32, i32, i32) {
    %c0_i32 = arith.constant 0 : i32
    %c0_i32_0 = arith.constant 0 : i32
    %c0_i32_1 = arith.constant 0 : i32
    %c0_i32_2 = arith.constant 0 : i32
    return %c0_i32, %c0_i32_0, %c0_i32_1 : i32, i32, i32
  }
  func.func @transform_3(%arg0: i32, %arg1: memref<1x2xi32, #tpu.memory_space<smem>>) -> (i32, i32, i32) {
    %c0_i32 = arith.constant 0 : i32
    %c0_i32_0 = arith.constant 0 : i32
    %c0_i32_1 = arith.constant 0 : i32
    %c0_i32_2 = arith.constant 0 : i32
    return %c0_i32, %c0_i32_0, %c0_i32_1 : i32, i32, i32
  }
  func.func @transform_4(%arg0: i32, %arg1: memref<1x2xi32, #tpu.memory_space<smem>>) -> (i32, i32, i32) {
    %c0_i32 = arith.constant 0 : i32
    %c0_i32_0 = arith.constant 0 : i32
    %c0_i32_1 = arith.constant 0 : i32
    %c0_i32_2 = arith.constant 0 : i32
    return %c0_i32, %c0_i32_0, %c0_i32_1 : i32, i32, i32
  }
  func.func @transform_5(%arg0: i32, %arg1: memref<1x2xi32, #tpu.memory_space<smem>>) -> (i32, i32, i32) {
    %c0_i32 = arith.constant 0 : i32
    %c0_i32_0 = arith.constant 0 : i32
    %c0_i32_1 = arith.constant 0 : i32
    %c0_i32_2 = arith.constant 0 : i32
    return %c0_i32, %c0_i32_0, %c0_i32_1 : i32, i32, i32
  }
  func.func @transform_6(%arg0: i32, %arg1: memref<1x2xi32, #tpu.memory_space<smem>>) -> (i32, i32) {
    %c0_i32 = arith.constant 0 : i32
    %c0_i32_0 = arith.constant 0 : i32
    %c0_i32_1 = arith.constant 0 : i32
    return %c0_i32, %c0_i32_0 : i32, i32
  }
  func.func @transform_7(%arg0: i32, %arg1: memref<1x2xi32, #tpu.memory_space<smem>>) -> (i32, i32, i32) {
    %c0_i32 = arith.constant 0 : i32
    %c0_i32_0 = arith.constant 0 : i32
    %c0_i32_1 = arith.constant 0 : i32
    %c0_i32_2 = arith.constant 0 : i32
    return %c0_i32, %c0_i32_0, %c0_i32_1 : i32, i32, i32
  }
  func.func @transform_8(%arg0: i32, %arg1: memref<1x2xi32, #tpu.memory_space<smem>>) -> (i32, i32) {
    %c0_i32 = arith.constant 0 : i32
    %c0_i32_0 = arith.constant 0 : i32
    %c0_i32_1 = arith.constant 0 : i32
    return %c0_i32, %c0_i32_0 : i32, i32
  }
  func.func @transform_9(%arg0: i32, %arg1: memref<1x2xi32, #tpu.memory_space<smem>>) -> (i32, i32) {
    %c0_i32 = arith.constant 0 : i32
    %c0_i32_0 = arith.constant 0 : i32
    %c0_i32_1 = arith.constant 0 : i32
    return %c0_i32, %c0_i32_0 : i32, i32
  }
  func.func @transform_10(%arg0: i32, %arg1: memref<1x2xi32, #tpu.memory_space<smem>>) -> (i32, i32) {
    %c0_i32 = arith.constant 0 : i32
    %c0_i32_0 = arith.constant 0 : i32
    %c0_i32_1 = arith.constant 0 : i32
    return %c0_i32, %c0_i32_0 : i32, i32
  }
  func.func @transform_11(%arg0: i32, %arg1: memref<1x2xi32, #tpu.memory_space<smem>>) -> (i32, i32) {
    %c0_i32 = arith.constant 0 : i32
    %c0_i32_0 = arith.constant 0 : i32
    %c0_i32_1 = arith.constant 0 : i32
    return %c0_i32, %c0_i32_0 : i32, i32
  }
  func.func @transform_12(%arg0: i32, %arg1: memref<1x2xi32, #tpu.memory_space<smem>>) -> (i32, i32) {
    %c0_i32 = arith.constant 0 : i32
    %c0_i32_0 = arith.constant 0 : i32
    %c0_i32_1 = arith.constant 0 : i32
    return %c0_i32, %c0_i32_0 : i32, i32
  }
  func.func @transform_13(%arg0: i32, %arg1: memref<1x2xi32, #tpu.memory_space<smem>>) -> (i32, i32) {
    %c0_i32 = arith.constant 0 : i32
    %c0_i32_0 = arith.constant 0 : i32
    %c0_i32_1 = arith.constant 0 : i32
    return %c0_i32, %c0_i32_0 : i32, i32
  }
  func.func @transform_14(%arg0: i32, %arg1: memref<1x2xi32, #tpu.memory_space<smem>>) -> (i32, i32, i32) {
    %c0_i32 = arith.constant 0 : i32
    %c0_i32_0 = arith.constant 0 : i32
    %c0_i32_1 = arith.constant 0 : i32
    return %arg0, %c0_i32, %c0_i32_0 : i32, i32, i32
  }
  func.func @transform_15(%arg0: i32, %arg1: memref<1x2xi32, #tpu.memory_space<smem>>) -> (i32, i32, i32) {
    %c0_i32 = arith.constant 0 : i32
    %c0_i32_0 = arith.constant 0 : i32
    %c0_i32_1 = arith.constant 0 : i32
    %c0_i32_2 = arith.constant 0 : i32
    return %c0_i32, %c0_i32_0, %c0_i32_1 : i32, i32, i32
  }
  func.func @transform_16(%arg0: i32, %arg1: memref<1x2xi32, #tpu.memory_space<smem>>) -> (i32, i32, i32) {
    %c0_i32 = arith.constant 0 : i32
    %c0_i32_0 = arith.constant 0 : i32
    %c0_i32_1 = arith.constant 0 : i32
    %c0_i32_2 = arith.constant 0 : i32
    return %c0_i32, %c0_i32_0, %c0_i32_1 : i32, i32, i32
  }
  func.func @transform_17(%arg0: i32, %arg1: memref<1x2xi32, #tpu.memory_space<smem>>) -> (i32, i32, i32) {
    %c0_i32 = arith.constant 0 : i32
    %c0_i32_0 = arith.constant 0 : i32
    %c0_i32_1 = arith.constant 0 : i32
    return %arg0, %c0_i32, %c0_i32_0 : i32, i32, i32
  }
}

</mosaic_0001>

<llo_original>
// kernel: tpu_custom_call.1
$region0: #{tpu_custom_call.1}
  #allocation0 [shape = 'u32[]', space=smem, size = 0x4, offset = 0x4, fixed_abs, tag = 'smem constant byte address 0x4 - core index']
  #allocation1 [shape = 'u32[144,128]{1,0:T(1,128)}', space=vmem, size = 0x12000, scoped, tag = 'internal scratch']
  #allocation2 [shape = 'f32[2,2,32]{2,1,0:T(2,128)}', space=vmem, size = 0x800, scoped, tag = 'scratch operand']
  #allocation3 [shape = 'f32[2,2,32]{2,1,0:T(2,128)}', space=vmem, size = 0x800, scoped, tag = 'scratch operand']
  #allocation4 [shape = 's32[1]{0}', space=sflag, size = 0x4, scoped, tag = 'scoped memory for tpu_custom_call.1']
  #allocation5 [shape = 'u8[512]{0}', space=smem, size = 0x200, scoped, tag = 'prefetched SMEM operand 0']
  #allocation6 [shape = 'f32[1,1]{1,0:T(1,128)S(1)}', space=vmem, size = 0x200, scoped, tag = 'scoped memory for tpu_custom_call.1']
  %s0 = inlined_call_operand.hbm [shape: s32[1,2], index: 0, kind: input, shape index: {}]
  %s1 = inlined_call_operand.vmem [shape: f32[40,1,32], index: 1, kind: input, shape index: {}]
  %s2 = inlined_call_operand.hbm [shape: f32[2,64,128], index: 2, kind: input, shape index: {}]
  %s3 = inlined_call_operand.vmem [shape: f32[2,1,128], index: 3, kind: input, shape index: {}]
  %s4 = inlined_call_operand.hbm [shape: f32[2,2,32], index: 4, kind: input, shape index: {}]
  %s5 = inlined_call_operand.vmem [shape: f32[2,2,32], index: 5, kind: input, shape index: {}]
  %s6 = inlined_call_operand.vmem [shape: f32[2,4,16], index: 6, kind: input, shape index: {}]
  %s7 = inlined_call_operand.vmem [shape: f32[1,32], index: 7, kind: input, shape index: {}]
  %s8 = inlined_call_operand.vmem [shape: f32[1,1,16], index: 8, kind: input, shape index: {}]
  %s9 = inlined_call_operand.<no memory space> [shape: f32[1,1], index: 9, kind: input, shape index: {}]
  %s10 = inlined_call_operand.vmem [shape: f32[32,32], index: 10, kind: input, shape index: {}]
  %s11 = inlined_call_operand.vmem [shape: f32[16,32], index: 11, kind: input, shape index: {}]
  %s12 = inlined_call_operand.vmem [shape: f32[1,32], index: 12, kind: input, shape index: {}]
  %s13 = inlined_call_operand.vmem [shape: f32[32,40], index: 13, kind: input, shape index: {}]
  %s14 = inlined_call_operand.vmem [shape: f32[1,40], index: 14, kind: input, shape index: {}]
  %s15 = inlined_call_operand.hbm [shape: f32[1,2,40], index: 15, kind: output, shape index: {0}]
  %s16 = inlined_call_operand.hbm [shape: f32[2,2,32], index: 16, kind: output, shape index: {1}]
  %s17 = inlined_call_operand.hbm [shape: f32[2,2,32], index: 17, kind: output, shape index: {2}]
  %s18 = inlined_call_operand.hbm [shape: f32[1,2,4], index: 18, kind: output, shape index: {3}]
  %19 = xla_tuple %s15, %s16, %s17, %s18
  %s20 = sld [smem:[#allocation0]]
  $region106: #{tpu_custom_call.1} parent=0
    _
  %s22 = ssub.s32 1, %s20
  %s23 = scalar_select 0, %s22, %s20
  %25 = dma.hbm_to_smem %s0, 16, [#allocation5], [#allocation4]
  %v26 = vstv %s9
  %27 = vst [vmem:[#allocation6] sm:$0x1] %v26
  %28 = dma.done [#allocation4], 16
  %29 = sfence
  $region1: #{tpu_custom_call.1} parent=0
    #allocation7 [shape = 'u8[65536]{0}', space=vmem, size = 0x10000, scoped, tag = 'input window, operand 2, single buffered']
    #allocation8 [shape = 's32[1]{0}', space=sflag, size = 0x4, scoped, tag = 'scoped memory for tpu_custom_call.1']
    #allocation9 [shape = 's32[1]{0}', space=sflag, size = 0x4, scoped, tag = 'scoped memory for tpu_custom_call.1']
    #allocation10 [shape = 'u8[2048]{0}', space=vmem, size = 0x800, scoped, tag = 'input window, operand 4, single buffered']
    #allocation11 [shape = 's32[1]{0}', space=sflag, size = 0x4, scoped, tag = 'scoped memory for tpu_custom_call.1']
    #allocation12 [shape = 'u8[1024]{0}', space=vmem, size = 0x400, scoped, tag = 'output window, operand 0, single buffered']
    #allocation13 [shape = 'u8[2048]{0}', space=vmem, size = 0x800, scoped, tag = 'output window, operand 1, single buffered']
    #allocation14 [shape = 's32[1]{0}', space=sflag, size = 0x4, scoped, tag = 'scoped memory for tpu_custom_call.1']
    #allocation15 [shape = 'u8[2048]{0}', space=vmem, size = 0x800, scoped, tag = 'output window, operand 2, single buffered']
    #allocation16 [shape = 'u8[1024]{0}', space=vmem, size = 0x400, scoped, tag = 'output window, operand 3, single buffered']
    #allocation17 [shape = 's32[1]{0}', space=sflag, size = 0x4, scoped, tag = 'scoped memory for tpu_custom_call.1']
    %30 = vsyncpa [#allocation8], 0
    %31 = vsyncpa [#allocation11], 0
    %32 = vsyncpa [#allocation9], 0
    %33 = vsyncpa [#allocation14], 0
    %34 = vsyncpa [#allocation17], 0
    // Predicated region
    $region2: #{tpu_custom_call.1} parent=1 // pred_check
      _
    $region3: #{tpu_custom_call.1} parent=1 // pred_check_branch
      %36 = sbr.rel (0) target = $region5
    $region4: #{tpu_custom_call.1} parent=1 // pred_region
      _
    $region5: #{tpu_custom_call.1} parent=1 // pred_fallthru
      _
    // Predicated region
    $region6: #{tpu_custom_call.1} parent=1 // pred_check
      _
    $region7: #{tpu_custom_call.1} parent=1 // pred_check_branch
      %38 = sbr.rel (0) target = $region9
    $region8: #{tpu_custom_call.1} parent=1 // pred_region
      %s40 = ssub.s32 2048, 2048
      %41 = vsyncadd [#allocation8], %s40
      %s42 = sshll.u32 [#allocation7], 4
      %s43 = int_to_ptr.vmem [resolvable:$true] %s42
      %48 = dma.hbm_to_vmem [thread:$0]  %s2, 2048, %s43, [#allocation8], 128, 128, 8
    $region9: #{tpu_custom_call.1} parent=1 // pred_fallthru
      _
    // Predicated region
    $region10: #{tpu_custom_call.1} parent=1 // pred_check
      _
    $region11: #{tpu_custom_call.1} parent=1 // pred_check_branch
      %50 = sbr.rel (0) target = $region13
    $region12: #{tpu_custom_call.1} parent=1 // pred_region
      _
    $region13: #{tpu_custom_call.1} parent=1 // pred_fallthru
      _
    // Predicated region
    $region14: #{tpu_custom_call.1} parent=1 // pred_check
      _
    $region15: #{tpu_custom_call.1} parent=1 // pred_check_branch
      %52 = sbr.rel (0) target = $region17
    $region16: #{tpu_custom_call.1} parent=1 // pred_region
      %s54 = ssub.s32 64, 64
      %55 = vsyncadd [#allocation11], %s54
      %s56 = sshll.u32 [#allocation10], 4
      %s57 = int_to_ptr.vmem [resolvable:$true] %s56
      %62 = dma.hbm_to_vmem [thread:$0]  %s4, 64, %s57, [#allocation11], 32, 32, 2
    $region17: #{tpu_custom_call.1} parent=1 // pred_fallthru
      _
    // Predicated region
    $region18: #{tpu_custom_call.1} parent=1 // pred_check
      _
    $region19: #{tpu_custom_call.1} parent=1 // pred_check_branch
      %64 = sbr.rel (0) target = $region21
    $region20: #{tpu_custom_call.1} parent=1 // pred_region
      _
    $region21: #{tpu_custom_call.1} parent=1 // pred_fallthru
      _
    // Predicated region
    $region22: #{tpu_custom_call.1} parent=1 // pred_check
      _
    $region23: #{tpu_custom_call.1} parent=1 // pred_check_branch
      %66 = sbr.rel (0) target = $region25
    $region24: #{tpu_custom_call.1} parent=1 // pred_region
      _
    $region25: #{tpu_custom_call.1} parent=1 // pred_fallthru
      _
    // Predicated region
    $region26: #{tpu_custom_call.1} parent=1 // pred_check
      _
    $region27: #{tpu_custom_call.1} parent=1 // pred_check_branch
      %68 = sbr.rel (0) target = $region29
    $region28: #{tpu_custom_call.1} parent=1 // pred_region
      _
    $region29: #{tpu_custom_call.1} parent=1 // pred_fallthru
      _
    // Predicated region
    $region30: #{tpu_custom_call.1} parent=1 // pred_check
      _
    $region31: #{tpu_custom_call.1} parent=1 // pred_check_branch
      %70 = sbr.rel (0) target = $region33
    $region32: #{tpu_custom_call.1} parent=1 // pred_region
      _
    $region33: #{tpu_custom_call.1} parent=1 // pred_fallthru
      _
    // Predicated region
    $region34: #{tpu_custom_call.1} parent=1 // pred_check
      _
    $region35: #{tpu_custom_call.1} parent=1 // pred_check_branch
      %72 = sbr.rel (0) target = $region37
    $region36: #{tpu_custom_call.1} parent=1 // pred_region
      _
    $region37: #{tpu_custom_call.1} parent=1 // pred_fallthru
      _
    // Predicated region
    $region38: #{tpu_custom_call.1} parent=1 // pred_check
      _
    $region39: #{tpu_custom_call.1} parent=1 // pred_check_branch
      %74 = sbr.rel (0) target = $region41
    $region40: #{tpu_custom_call.1} parent=1 // pred_region
      _
    $region41: #{tpu_custom_call.1} parent=1 // pred_fallthru
      _
    // Predicated region
    $region42: #{tpu_custom_call.1} parent=1 // pred_check
      _
    $region43: #{tpu_custom_call.1} parent=1 // pred_check_branch
      %76 = sbr.rel (0) target = $region45
    $region44: #{tpu_custom_call.1} parent=1 // pred_region
      _
    $region45: #{tpu_custom_call.1} parent=1 // pred_fallthru
      _
    // Predicated region
    $region46: #{tpu_custom_call.1} parent=1 // pred_check
      _
    $region47: #{tpu_custom_call.1} parent=1 // pred_check_branch
      %78 = sbr.rel (0) target = $region49
    $region48: #{tpu_custom_call.1} parent=1 // pred_region
      _
    $region49: #{tpu_custom_call.1} parent=1 // pred_fallthru
      _
    // Predicated region
    $region50: #{tpu_custom_call.1} parent=1 // pred_check
      _
    $region51: #{tpu_custom_call.1} parent=1 // pred_check_branch
      %80 = sbr.rel (0) target = $region53
    $region52: #{tpu_custom_call.1} parent=1 // pred_region
      _
    $region53: #{tpu_custom_call.1} parent=1 // pred_fallthru
      _
    // Predicated region
    $region54: #{tpu_custom_call.1} parent=1 // pred_check
      _
    $region55: #{tpu_custom_call.1} parent=1 // pred_check_branch
      %82 = sbr.rel (0) target = $region57
    $region56: #{tpu_custom_call.1} parent=1 // pred_region
      _
    $region57: #{tpu_custom_call.1} parent=1 // pred_fallthru
      _
    // Predicated region
    $region58: #{tpu_custom_call.1} parent=1 // pred_check
      _
    $region59: #{tpu_custom_call.1} parent=1 // pred_check_branch
      %84 = sbr.rel (0) target = $region61
    $region60: #{tpu_custom_call.1} parent=1 // pred_region
      %85 = dma.done [#allocation8], 2048
    $region61: #{tpu_custom_call.1} parent=1 // pred_fallthru
      _
    // Predicated region
    $region62: #{tpu_custom_call.1} parent=1 // pred_check
      _
    $region63: #{tpu_custom_call.1} parent=1 // pred_check_branch
      %87 = sbr.rel (0) target = $region65
    $region64: #{tpu_custom_call.1} parent=1 // pred_region
      %88 = dma.done [#allocation11], 64
    $region65: #{tpu_custom_call.1} parent=1 // pred_fallthru
      _
    %p89 = scmp.eq.s32.totalorder 0, 0
    // Predicated region
    $region66: #{tpu_custom_call.1} parent=1 // pred_check
      %p90 = pneg %p89
    $region67: #{tpu_custom_call.1} parent=1 // pred_check_branch
      %92 = sbr.rel (%p90) target = $region69
    $region68: #{tpu_custom_call.1} parent=1 // pred_region
      %v93 = vld [vmem:[#allocation10] sm:$0x3]
      %v94 = vld [vmem:[#allocation10 + $0x2] sm:$0x3]
      %vm95 = vcmask 254976
      %96 = vst.msk [vmem:[#allocation2] sm:$0x3] %vm95, %v93
      %97 = vst.msk [vmem:[#allocation2 + $0x2] sm:$0x3] %vm95, %v94
      %v98 = vld [vmem:[%s5] sm:$0x3]
      %v99 = vld [vmem:[%s5 + $0x2] sm:$0x3]
      %100 = vst.msk [vmem:[#allocation3] sm:$0x3] %vm95, %v98
      %101 = vst.msk [vmem:[#allocation3 + $0x2] sm:$0x3] %vm95, %v99
    $region69: #{tpu_custom_call.1} parent=1 // pred_fallthru
      _
    %s102 = smul.u32 0, 128
    %s103 = sld [smem:[#allocation5 + %s102]]
    %s104 = scalar_lea.vmem %s1, %s103
    %v105 = vld [vmem:[%s104] sm:$0x1]
    %s106 = sadd.s32 %s102, 1
    %s107 = sld [smem:[#allocation5 + %s106]]
    %s108 = scalar_lea.vmem %s1, %s107
    %v109 = vld [vmem:[%s108] sm:$0x1]
    %v111 = vlaneseq
    %v112 = vshrl.u32 %v111, 7
    %v113 = vsub.s32 0, %v112
    %v114 = vrot.slane %v109, %v113
    %vm116 = vcmask 1040384
    %v117 = vsel %vm116, %v105, %v114
    %v118 = vld [vmem:[#allocation2] sm:$0x3]
    %v119 = vld [vmem:[#allocation3] sm:$0x3]
    %121 = vrot.lane.b32.xlu0 %v118, 32
    %v122 = vpop.permute.xlu0 %121
    %vm124 = vcmask 261120
    %v125 = vsel %vm124, %v117, %v122
    %v126 = vld [vmem:[#allocation7] sm:$0xff]
    %v127 = vld [vmem:[#allocation7 + $0x8] sm:$0xff]
    %v128 = vld [vmem:[#allocation7 + $0x10] sm:$0xff]
    %v129 = vld [vmem:[#allocation7 + $0x18] sm:$0xff]
    %v130 = vld [vmem:[#allocation7 + $0x20] sm:$0xff]
    %v131 = vld [vmem:[#allocation7 + $0x28] sm:$0xff]
    %v132 = vld [vmem:[#allocation7 + $0x30] sm:$0xff]
    %v133 = vld [vmem:[#allocation7 + $0x38] sm:$0xff]
    %v134 = vld [vmem:[%s3] sm:$0x1]
    %v136 = vlaneseq
    %v137 = vshrl.u32 %v136, 7
    %v138 = vsub.s32 0, %v137
    %v139 = vrot.slane %v134, %v138
    %vm141 = vcmask 523264
    %v143 = vsel %vm141, %v125, 0
    %145 = vmatprep.subr.mxu0 0.0
    %146 = vmatpush1.msra.mxu0 %v126
    %147 = vmatprep.subr.mxu0 0.0
    %148 = vmatpush1.msra.mxu0 %v127
    %149 = vmatprep.subr.mxu0 0.0
    %150 = vmatpush1.msra.mxu0 %v128
    %151 = vmatprep.subr.mxu0 0.0
    %152 = vmatpush1.msra.mxu0 %v129
    %153 = vmatprep.subr.mxu0 0.0
    %154 = vmatpush1.msra.mxu0 %v130
    %155 = vmatprep.subr.mxu0 0.0
    %156 = vmatpush1.msra.mxu0 %v131
    %157 = vmatprep.subr.mxu0 0.0
    %158 = vmatpush1.msra.mxu0 %v132
    %159 = vmatprep.subr.mxu0 0.0
    %160 = vmatpush1.msra.mxu0 %v133
    %161 = vmatprep.subr.mxu0 0.0
    %162 = vmatpush1.msra.mxu0 0.0
    %163 = vmatprep.subr.mxu0 0.0
    %164 = vmatpush1.msra.mxu0 0.0
    %165 = vmatprep.subr.mxu0 0.0
    %166 = vmatpush1.msra.mxu0 0.0
    %167 = vmatprep.subr.mxu0 0.0
    %168 = vmatpush1.msra.mxu0 0.0
    %169 = vmatprep.subr.mxu0 0.0
    %170 = vmatpush1.msra.mxu0 0.0
    %171 = vmatprep.subr.mxu0 0.0
    %172 = vmatpush1.msra.mxu0 0.0
    %173 = vmatprep.subr.mxu0 0.0
    %174 = vmatpush1.msra.mxu0 0.0
    %175 = vmatprep.subr.mxu0 0.0
    %176 = vmatpush1.msra.mxu0 0.0
    %177 = vmatprep.subr.mxu0 0.0
    %178 = vmatpush1.msra.mxu0 0.0
    %179 = vmatprep.subr.mxu0 0.0
    %180 = vmatpush1.msra.mxu0 0.0
    %181 = vmatprep.subr.mxu0 0.0
    %182 = vmatpush1.msra.mxu0 0.0
    %183 = vmatprep.subr.mxu0 0.0
    %184 = vmatpush1.msra.mxu0 0.0
    %185 = vmatprep.subr.mxu0 0.0
    %186 = vmatpush1.msra.mxu0 0.0
    %187 = vmatprep.subr.mxu0 0.0
    %188 = vmatpush1.msra.mxu0 0.0
    %189 = vmatprep.subr.mxu0 0.0
    %190 = vmatpush1.msra.mxu0 0.0
    %191 = vmatprep.subr.mxu0 0.0
    %192 = vmatpush1.msra.mxu0 0.0
    %193 = vmatprep.subr.mxu0 0.0
    %194 = vmatpush1.msra.mxu0 0.0
    %195 = vmatprep.subr.mxu0 0.0
    %196 = vmatpush1.msra.mxu0 0.0
    %197 = vmatprep.subr.mxu0 0.0
    %198 = vmatpush1.msra.mxu0 0.0
    %199 = vmatprep.subr.mxu0 0.0
    %200 = vmatpush1.msra.mxu0 0.0
    %201 = vmatprep.subr.mxu0 0.0
    %202 = vmatpush1.msra.mxu0 0.0
    %203 = vmatprep.subr.mxu0 0.0
    %204 = vmatpush1.msra.mxu0 0.0
    %205 = vmatprep.subr.mxu0 0.0
    %206 = vmatpush1.msra.mxu0 0.0
    %207 = vmatprep.subr.mxu0 0.0
    %208 = vmatpush1.msra.mxu0 0.0
    %209 = vmatprep.mubr.f32.mxu0 0.0
    %210 = vmatmul.mubr.f32.gmra.mrb[0].mxu0 %v143
    %v211 = vpop.f32.mrb[0].mxu0
    %v212 = vadd.f32 %v139, %v211
    %v213 = vpop.f32.mrb[0].mxu0
    %214 = vdwg.mxu0
    %v215 = vsub.f32 0.0, %v212
    %v216 = vmul.f32 %v215, 1.442695
    %v217 = vpow.pop %v216
    %v218 = vadd.f32 %v217, 1.0
    %v219 = vrcp.pop %v218
    %v220 = vmul.f32 1.0, %v219
    %v221 = vtanh.pop %v212
    %223 = vrot.lane.b32.xlu0 %v119, 32
    %v224 = vpop.permute.xlu0 %223
    %v226 = vmul.f32 %v220, %v224
    %228 = vrot.lane.b32.xlu0 %v221, 64
    %v229 = vpop.permute.xlu0 %228
    %v231 = vmul.f32 %v220, %v229
    %233 = vrot.lane.b32.xlu0 %v231, 32
    %v234 = vpop.permute.xlu0 %233
    %v236 = vadd.f32 %v226, %v234
    %v237 = vtanh.pop %v236
    %239 = vrot.lane.b32.xlu0 %v237, 64
    %v240 = vpop.permute.xlu0 %239
    %v242 = vmul.f32 %v220, %v240
    %244 = vrot.lane.b32.xlu0 %v242, 32
    %v245 = vpop.permute.xlu0 %244
    %vm247 = vcmask 254976
    %248 = vst.msk [vmem:[#allocation2] sm:$0x3] %vm247, %v245
    %250 = vrot.lane.b32.xlu0 %v236, 96
    %v251 = vpop.permute.xlu0 %250
    %253 = vst.msk [vmem:[#allocation3] sm:$0x3] %vm247, %v251
    %s254 = scalar_lea.vmem [#allocation2], 2
    %v255 = vld [vmem:[%s254] sm:$0x3]
    %s256 = scalar_lea.vmem [#allocation3], 2
    %v257 = vld [vmem:[%s256] sm:$0x3]
    %259 = vrot.lane.b32.xlu0 %v255, 32
    %v260 = vpop.permute.xlu0 %259
    %v262 = vsel %vm124, %v245, %v260
    %s263 = scalar_lea.vmem [#allocation7], 64
    %v264 = vld [vmem:[%s263] sm:$0xff]
    %v265 = vld [vmem:[%s263 + $0x8] sm:$0xff]
    %v266 = vld [vmem:[%s263 + $0x10] sm:$0xff]
    %v267 = vld [vmem:[%s263 + $0x18] sm:$0xff]
    %v268 = vld [vmem:[%s263 + $0x20] sm:$0xff]
    %v269 = vld [vmem:[%s263 + $0x28] sm:$0xff]
    %v270 = vld [vmem:[%s263 + $0x30] sm:$0xff]
    %v271 = vld [vmem:[%s263 + $0x38] sm:$0xff]
    %s272 = scalar_lea.vmem %s3, 1
    %v273 = vld [vmem:[%s272] sm:$0x1]
    %v275 = vlaneseq
    %v276 = vshrl.u32 %v275, 7
    %v277 = vsub.s32 0, %v276
    %v278 = vrot.slane %v273, %v277
    %v281 = vsel %vm141, %v262, 0
    %283 = vmatprep.subr.mxu0 0.0
    %284 = vmatpush1.msra.mxu0 %v264
    %285 = vmatprep.subr.mxu0 0.0
    %286 = vmatpush1.msra.mxu0 %v265
    %287 = vmatprep.subr.mxu0 0.0
    %288 = vmatpush1.msra.mxu0 %v266
    %289 = vmatprep.subr.mxu0 0.0
    %290 = vmatpush1.msra.mxu0 %v267
    %291 = vmatprep.subr.mxu0 0.0
    %292 = vmatpush1.msra.mxu0 %v268
    %293 = vmatprep.subr.mxu0 0.0
    %294 = vmatpush1.msra.mxu0 %v269
    %295 = vmatprep.subr.mxu0 0.0
    %296 = vmatpush1.msra.mxu0 %v270
    %297 = vmatprep.subr.mxu0 0.0
    %298 = vmatpush1.msra.mxu0 %v271
    %299 = vmatprep.subr.mxu0 0.0
    %300 = vmatpush1.msra.mxu0 0.0
    %301 = vmatprep.subr.mxu0 0.0
    %302 = vmatpush1.msra.mxu0 0.0
    %303 = vmatprep.subr.mxu0 0.0
    %304 = vmatpush1.msra.mxu0 0.0
    %305 = vmatprep.subr.mxu0 0.0
    %306 = vmatpush1.msra.mxu0 0.0
    %307 = vmatprep.subr.mxu0 0.0
    %308 = vmatpush1.msra.mxu0 0.0
    %309 = vmatprep.subr.mxu0 0.0
    %310 = vmatpush1.msra.mxu0 0.0
    %311 = vmatprep.subr.mxu0 0.0
    %312 = vmatpush1.msra.mxu0 0.0
    %313 = vmatprep.subr.mxu0 0.0
    %314 = vmatpush1.msra.mxu0 0.0
    %315 = vmatprep.subr.mxu0 0.0
    %316 = vmatpush1.msra.mxu0 0.0
    %317 = vmatprep.subr.mxu0 0.0
    %318 = vmatpush1.msra.mxu0 0.0
    %319 = vmatprep.subr.mxu0 0.0
    %320 = vmatpush1.msra.mxu0 0.0
    %321 = vmatprep.subr.mxu0 0.0
    %322 = vmatpush1.msra.mxu0 0.0
    %323 = vmatprep.subr.mxu0 0.0
    %324 = vmatpush1.msra.mxu0 0.0
    %325 = vmatprep.subr.mxu0 0.0
    %326 = vmatpush1.msra.mxu0 0.0
    %327 = vmatprep.subr.mxu0 0.0
    %328 = vmatpush1.msra.mxu0 0.0
    %329 = vmatprep.subr.mxu0 0.0
    %330 = vmatpush1.msra.mxu0 0.0
    %331 = vmatprep.subr.mxu0 0.0
    %332 = vmatpush1.msra.mxu0 0.0
    %333 = vmatprep.subr.mxu0 0.0
    %334 = vmatpush1.msra.mxu0 0.0
    %335 = vmatprep.subr.mxu0 0.0
    %336 = vmatpush1.msra.mxu0 0.0
    %337 = vmatprep.subr.mxu0 0.0
    %338 = vmatpush1.msra.mxu0 0.0
    %339 = vmatprep.subr.mxu0 0.0
    %340 = vmatpush1.msra.mxu0 0.0
    %341 = vmatprep.subr.mxu0 0.0
    %342 = vmatpush1.msra.mxu0 0.0
    %343 = vmatprep.subr.mxu0 0.0
    %344 = vmatpush1.msra.mxu0 0.0
    %345 = vmatprep.subr.mxu0 0.0
    %346 = vmatpush1.msra.mxu0 0.0
    %347 = vmatprep.mubr.f32.mxu0 0.0
    %348 = vmatmul.mubr.f32.gmra.mrb[0].mxu0 %v281
    %v349 = vpop.f32.mrb[0].mxu0
    %v350 = vadd.f32 %v278, %v349
    %v351 = vpop.f32.mrb[0].mxu0
    %352 = vdwg.mxu0
    %v353 = vsub.f32 0.0, %v350
    %v354 = vmul.f32 %v353, 1.442695
    %v355 = vpow.pop %v354
    %v356 = vadd.f32 %v355, 1.0
    %v357 = vrcp.pop %v356
    %v358 = vmul.f32 1.0, %v357
    %v359 = vtanh.pop %v350
    %361 = vrot.lane.b32.xlu0 %v257, 32
    %v362 = vpop.permute.xlu0 %361
    %v364 = vmul.f32 %v358, %v362
    %366 = vrot.lane.b32.xlu0 %v359, 64
    %v367 = vpop.permute.xlu0 %366
    %v369 = vmul.f32 %v358, %v367
    %371 = vrot.lane.b32.xlu0 %v369, 32
    %v372 = vpop.permute.xlu0 %371
    %v374 = vadd.f32 %v364, %v372
    %v375 = vtanh.pop %v374
    %377 = vrot.lane.b32.xlu0 %v375, 64
    %v378 = vpop.permute.xlu0 %377
    %v380 = vmul.f32 %v358, %v378
    %382 = vrot.lane.b32.xlu0 %v380, 32
    %v383 = vpop.permute.xlu0 %382
    %385 = vst.msk [vmem:[%s254] sm:$0x3] %vm247, %v383
    %387 = vrot.lane.b32.xlu0 %v374, 96
    %v388 = vpop.permute.xlu0 %387
    %390 = vst.msk [vmem:[%s256] sm:$0x3] %vm247, %v388
    %v391 = vld [vmem:[%s6] sm:$0xf]
    %v392 = vld [vmem:[%s6 + $0x4] sm:$0xf]
    %v393 = vld [vmem:[%s7] sm:$0x1]
    %v395 = vlaneseq
    %v396 = vshrl.u32 %v395, 7
    %v397 = vsub.s32 0, %v396
    %v398 = vrot.slane %v393, %v397
    %399 = vrot.lane.b32.xlu0 %v398, 96
    %v400 = vpop.permute.xlu0 %399
    %v402 = vmul.f32 %v380, %v400
    %404 = vrot.lane.b32.xlu0 %v402, 32
    %v405 = vpop.permute.xlu0 %404
    %v407 = vsel %vm247, %v405, 0.0
    %408 = vadd.xlane.f32.xlu0 %v407
    %v409 = vpop.xlane.xlu0 %408
    %v410 = vld [vmem:[%s8] sm:$0x1]
    %v412 = vlaneseq
    %v413 = vshrl.u32 %v412, 7
    %v414 = vsub.s32 0, %v413
    %v415 = vrot.slane %v410, %v414
    %v417 = vmul.f32 %v391, %v415
    %v418 = vmul.f32 %v392, %v415
    %vm419 = vcmask 125952
    %v420 = vsel %vm419, %v417, 0.0
    %421 = vadd.xlane.f32.xlu0 %v420
    %v422 = vpop.xlane.xlu0 %421
    %v423 = vsel %vm419, %v418, 0.0
    %424 = vadd.xlane.f32.xlu0 %v423
    %v425 = vpop.xlane.xlu0 %424
    %v428 = vlaneseq
    %v429 = vand.u32 %v428, 127
    %v430 = vlaneseq
    %v431 = vshrl.u32 %v430, 7
    %v432 = vsub.s32 %v429, %v431
    %v433 = vrot.slane %v422, %v432
    %v434 = vlaneseq
    %v435 = vshrl.u32 %v434, 7
    %v436 = vsub.s32 %v429, %v435
    %v437 = vrot.slane %v425, %v436
    %vm438 = vcmask 1041409
    %v439 = vsel %vm438, %v437, %v433
    %v441 = vadd.f32 %v409, %v439
    %v442 = vld [vmem:[#allocation6] sm:$0x1]
    %v444 = vlaneseq
    %v445 = vshrl.u32 %v444, 7
    %v446 = vsub.s32 0, %v445
    %v447 = vrot.slane %v442, %v446
    %448 = vset.pattern.permute.xlu0 0
    %449 = vperm.xlu0 %448, %v447
    %v450 = vpop.permute.xlu0 %449
    %v452 = vadd.f32 %v441, %v450
    %v453 = vtanh.pop %v452
    %vm454 = vcmask 25600
    %v455 = vsel %vm454, %v453, -inf
    %456 = vmax.xlane.f32.xlu0 %v455
    %v457 = vpop.xlane.xlu0 %456
    %v458 = vsub.f32 %v453, %v457
    %v459 = vmul.f32 %v458, 1.442695
    %v460 = vpow.pop %v459
    %v461 = vsel %vm454, %v460, 0.0
    %462 = vadd.xlane.f32.xlu0 %v461
    %v463 = vpop.xlane.xlu0 %462
    %v464 = vrcp.pop %v463
    %v465 = vmul.f32 %v460, %v464
    %466 = vst.msk [vmem:[#allocation16] sm:$0x3] %vm454, %v465
    %v467 = vlaneseq
    %v468 = vshrl.u32 %v467, 7
    %v469 = vsub.s32 0, %v468
    %v470 = vrot.slane %v465, %v469
    %472 = vbcast.lane.b32.xlu0 %v470, 256
    %v473 = vpop.permute.xlu0 %472
    %v474 = vlaneseq
    %v475 = vshrl.u32 %v474, 7
    %v476 = vsub.s32 1, %v475
    %v477 = vrot.slane %v465, %v476
    %479 = vbcast.lane.b32.xlu0 %v477, 256
    %v480 = vpop.permute.xlu0 %479
    %v481 = vmul.f32 %v473, %v391
    %v482 = vmul.f32 %v480, %v392
    %v483 = vsel %vm419, %v481, 0.0
    %v484 = vrot.slane %v483, 4
    %v485 = vadd.f32 %v483, %v484
    %v486 = vrot.slane %v485, 2
    %v487 = vadd.f32 %v485, %v486
    %v488 = vrot.slane %v487, 1
    %v489 = vadd.f32 %v487, %v488
    %v490 = vsel %vm419, %v482, 0.0
    %v491 = vrot.slane %v490, 4
    %v492 = vadd.f32 %v490, %v491
    %v493 = vrot.slane %v492, 2
    %v494 = vadd.f32 %v492, %v493
    %v495 = vrot.slane %v494, 1
    %v496 = vadd.f32 %v494, %v495
    %v497 = vld [vmem:[%s10] sm:$0xff]
    %v498 = vld [vmem:[%s10 + $0x8] sm:$0xff]
    %v499 = vld [vmem:[%s10 + $0x10] sm:$0xff]
    %v500 = vld [vmem:[%s10 + $0x18] sm:$0xff]
    %v501 = vld [vmem:[%s11] sm:$0xff]
    %v502 = vld [vmem:[%s11 + $0x8] sm:$0xff]
    %v505 = vsel %vm438, %v496, %v489
    %vm506 = vcmask 130048
    %v507 = vsel %vm506, %v505, 0
    %509 = vmatprep.subr.mxu0 0.0
    %510 = vmatpush1.msra.mxu0 %v501
    %511 = vmatprep.subr.mxu0 0.0
    %512 = vmatpush1.msra.mxu0 %v502
    %513 = vmatprep.subr.mxu0 0.0
    %514 = vmatpush1.msra.mxu0 0.0
    %515 = vmatprep.subr.mxu0 0.0
    %516 = vmatpush1.msra.mxu0 0.0
    %517 = vmatprep.subr.mxu0 0.0
    %518 = vmatpush1.msra.mxu0 0.0
    %519 = vmatprep.subr.mxu0 0.0
    %520 = vmatpush1.msra.mxu0 0.0
    %521 = vmatprep.subr.mxu0 0.0
    %522 = vmatpush1.msra.mxu0 0.0
    %523 = vmatprep.subr.mxu0 0.0
    %524 = vmatpush1.msra.mxu0 0.0
    %525 = vmatprep.subr.mxu0 0.0
    %526 = vmatpush1.msra.mxu0 0.0
    %527 = vmatprep.subr.mxu0 0.0
    %528 = vmatpush1.msra.mxu0 0.0
    %529 = vmatprep.subr.mxu0 0.0
    %530 = vmatpush1.msra.mxu0 0.0
    %531 = vmatprep.subr.mxu0 0.0
    %532 = vmatpush1.msra.mxu0 0.0
    %533 = vmatprep.subr.mxu0 0.0
    %534 = vmatpush1.msra.mxu0 0.0
    %535 = vmatprep.subr.mxu0 0.0
    %536 = vmatpush1.msra.mxu0 0.0
    %537 = vmatprep.subr.mxu0 0.0
    %538 = vmatpush1.msra.mxu0 0.0
    %539 = vmatprep.subr.mxu0 0.0
    %540 = vmatpush1.msra.mxu0 0.0
    %541 = vmatprep.subr.mxu0 0.0
    %542 = vmatpush1.msra.mxu0 0.0
    %543 = vmatprep.subr.mxu0 0.0
    %544 = vmatpush1.msra.mxu0 0.0
    %545 = vmatprep.subr.mxu0 0.0
    %546 = vmatpush1.msra.mxu0 0.0
    %547 = vmatprep.subr.mxu0 0.0
    %548 = vmatpush1.msra.mxu0 0.0
    %549 = vmatprep.subr.mxu0 0.0
    %550 = vmatpush1.msra.mxu0 0.0
    %551 = vmatprep.subr.mxu0 0.0
    %552 = vmatpush1.msra.mxu0 0.0
    %553 = vmatprep.subr.mxu0 0.0
    %554 = vmatpush1.msra.mxu0 0.0
    %555 = vmatprep.subr.mxu0 0.0
    %556 = vmatpush1.msra.mxu0 0.0
    %557 = vmatprep.subr.mxu0 0.0
    %558 = vmatpush1.msra.mxu0 0.0
    %559 = vmatprep.subr.mxu0 0.0
    %560 = vmatpush1.msra.mxu0 0.0
    %561 = vmatprep.subr.mxu0 0.0
    %562 = vmatpush1.msra.mxu0 0.0
    %563 = vmatprep.subr.mxu0 0.0
    %564 = vmatpush1.msra.mxu0 0.0
    %565 = vmatprep.subr.mxu0 0.0
    %566 = vmatpush1.msra.mxu0 0.0
    %567 = vmatprep.subr.mxu0 0.0
    %568 = vmatpush1.msra.mxu0 0.0
    %569 = vmatprep.subr.mxu0 0.0
    %570 = vmatpush1.msra.mxu0 0.0
    %571 = vmatprep.subr.mxu0 0.0
    %572 = vmatpush1.msra.mxu0 0.0
    %573 = vmatprep.mubr.f32.mxu0 0.0
    %574 = vmatmul.mubr.f32.gmra.mrb[0].mxu0 %v507
    %v575 = vpop.f32.mrb[0].mxu0
    %v576 = vadd.f32 0.0, %v575
    %v577 = vpop.f32.mrb[0].mxu0
    %578 = vdwg.mxu0
    %v579 = vsel %vm124, %v383, 0
    %581 = vmatprep.subr.mxu0 0.0
    %582 = vmatpush1.msra.mxu0 %v497
    %583 = vmatprep.subr.mxu0 0.0
    %584 = vmatpush1.msra.mxu0 %v498
    %585 = vmatprep.subr.mxu0 0.0
    %586 = vmatpush1.msra.mxu0 %v499
    %587 = vmatprep.subr.mxu0 0.0
    %588 = vmatpush1.msra.mxu0 %v500
    %589 = vmatprep.subr.mxu0 0.0
    %590 = vmatpush1.msra.mxu0 0.0
    %591 = vmatprep.subr.mxu0 0.0
    %592 = vmatpush1.msra.mxu0 0.0
    %593 = vmatprep.subr.mxu0 0.0
    %594 = vmatpush1.msra.mxu0 0.0
    %595 = vmatprep.subr.mxu0 0.0
    %596 = vmatpush1.msra.mxu0 0.0
    %597 = vmatprep.subr.mxu0 0.0
    %598 = vmatpush1.msra.mxu0 0.0
    %599 = vmatprep.subr.mxu0 0.0
    %600 = vmatpush1.msra.mxu0 0.0
    %601 = vmatprep.subr.mxu0 0.0
    %602 = vmatpush1.msra.mxu0 0.0
    %603 = vmatprep.subr.mxu0 0.0
    %604 = vmatpush1.msra.mxu0 0.0
    %605 = vmatprep.subr.mxu0 0.0
    %606 = vmatpush1.msra.mxu0 0.0
    %607 = vmatprep.subr.mxu0 0.0
    %608 = vmatpush1.msra.mxu0 0.0
    %609 = vmatprep.subr.mxu0 0.0
    %610 = vmatpush1.msra.mxu0 0.0
    %611 = vmatprep.subr.mxu0 0.0
    %612 = vmatpush1.msra.mxu0 0.0
    %613 = vmatprep.subr.mxu0 0.0
    %614 = vmatpush1.msra.mxu0 0.0
    %615 = vmatprep.subr.mxu0 0.0
    %616 = vmatpush1.msra.mxu0 0.0
    %617 = vmatprep.subr.mxu0 0.0
    %618 = vmatpush1.msra.mxu0 0.0
    %619 = vmatprep.subr.mxu0 0.0
    %620 = vmatpush1.msra.mxu0 0.0
    %621 = vmatprep.subr.mxu0 0.0
    %622 = vmatpush1.msra.mxu0 0.0
    %623 = vmatprep.subr.mxu0 0.0
    %624 = vmatpush1.msra.mxu0 0.0
    %625 = vmatprep.subr.mxu0 0.0
    %626 = vmatpush1.msra.mxu0 0.0
    %627 = vmatprep.subr.mxu0 0.0
    %628 = vmatpush1.msra.mxu0 0.0
    %629 = vmatprep.subr.mxu0 0.0
    %630 = vmatpush1.msra.mxu0 0.0
    %631 = vmatprep.subr.mxu0 0.0
    %632 = vmatpush1.msra.mxu0 0.0
    %633 = vmatprep.subr.mxu0 0.0
    %634 = vmatpush1.msra.mxu0 0.0
    %635 = vmatprep.subr.mxu0 0.0
    %636 = vmatpush1.msra.mxu0 0.0
    %637 = vmatprep.subr.mxu0 0.0
    %638 = vmatpush1.msra.mxu0 0.0
    %639 = vmatprep.subr.mxu0 0.0
    %640 = vmatpush1.msra.mxu0 0.0
    %641 = vmatprep.subr.mxu0 0.0
    %642 = vmatpush1.msra.mxu0 0.0
    %643 = vmatprep.subr.mxu0 0.0
    %644 = vmatpush1.msra.mxu0 0.0
    %645 = vmatprep.mubr.f32.mxu0 0.0
    %646 = vmatmul.mubr.f32.gmra.mrb[0].mxu0 %v579
    %v647 = vpop.f32.mrb[0].mxu0
    %v648 = vadd.f32 %v576, %v647
    %v649 = vpop.f32.mrb[0].mxu0
    %650 = vdwg.mxu0
    %v651 = vld [vmem:[%s12] sm:$0x1]
    %v653 = vlaneseq
    %v654 = vshrl.u32 %v653, 7
    %v655 = vsub.s32 0, %v654
    %v656 = vrot.slane %v651, %v655
    %v658 = vadd.f32 %v648, %v656
    %v659 = vtanh.pop %v658
    %v660 = vld [vmem:[%s13] sm:$0xff]
    %v661 = vld [vmem:[%s13 + $0x8] sm:$0xff]
    %v662 = vld [vmem:[%s13 + $0x10] sm:$0xff]
    %v663 = vld [vmem:[%s13 + $0x18] sm:$0xff]
    %v664 = vld [vmem:[%s14] sm:$0x1]
    %v666 = vlaneseq
    %v667 = vshrl.u32 %v666, 7
    %v668 = vsub.s32 0, %v667
    %v669 = vrot.slane %v664, %v668
    %v672 = vsel %vm124, %v659, 0
    %674 = vmatprep.subr.mxu0 0.0
    %675 = vmatpush1.msra.mxu0 %v660
    %676 = vmatprep.subr.mxu0 0.0
    %677 = vmatpush1.msra.mxu0 %v661
    %678 = vmatprep.subr.mxu0 0.0
    %679 = vmatpush1.msra.mxu0 %v662
    %680 = vmatprep.subr.mxu0 0.0
    %681 = vmatpush1.msra.mxu0 %v663
    %682 = vmatprep.subr.mxu0 0.0
    %683 = vmatpush1.msra.mxu0 0.0
    %684 = vmatprep.subr.mxu0 0.0
    %685 = vmatpush1.msra.mxu0 0.0
    %686 = vmatprep.subr.mxu0 0.0
    %687 = vmatpush1.msra.mxu0 0.0
    %688 = vmatprep.subr.mxu0 0.0
    %689 = vmatpush1.msra.mxu0 0.0
    %690 = vmatprep.subr.mxu0 0.0
    %691 = vmatpush1.msra.mxu0 0.0
    %692 = vmatprep.subr.mxu0 0.0
    %693 = vmatpush1.msra.mxu0 0.0
    %694 = vmatprep.subr.mxu0 0.0
    %695 = vmatpush1.msra.mxu0 0.0
    %696 = vmatprep.subr.mxu0 0.0
    %697 = vmatpush1.msra.mxu0 0.0
    %698 = vmatprep.subr.mxu0 0.0
    %699 = vmatpush1.msra.mxu0 0.0
    %700 = vmatprep.subr.mxu0 0.0
    %701 = vmatpush1.msra.mxu0 0.0
    %702 = vmatprep.subr.mxu0 0.0
    %703 = vmatpush1.msra.mxu0 0.0
    %704 = vmatprep.subr.mxu0 0.0
    %705 = vmatpush1.msra.mxu0 0.0
    %706 = vmatprep.subr.mxu0 0.0
    %707 = vmatpush1.msra.mxu0 0.0
    %708 = vmatprep.subr.mxu0 0.0
    %709 = vmatpush1.msra.mxu0 0.0
    %710 = vmatprep.subr.mxu0 0.0
    %711 = vmatpush1.msra.mxu0 0.0
    %712 = vmatprep.subr.mxu0 0.0
    %713 = vmatpush1.msra.mxu0 0.0
    %714 = vmatprep.subr.mxu0 0.0
    %715 = vmatpush1.msra.mxu0 0.0
    %716 = vmatprep.subr.mxu0 0.0
    %717 = vmatpush1.msra.mxu0 0.0
    %718 = vmatprep.subr.mxu0 0.0
    %719 = vmatpush1.msra.mxu0 0.0
    %720 = vmatprep.subr.mxu0 0.0
    %721 = vmatpush1.msra.mxu0 0.0
    %722 = vmatprep.subr.mxu0 0.0
    %723 = vmatpush1.msra.mxu0 0.0
    %724 = vmatprep.subr.mxu0 0.0
    %725 = vmatpush1.msra.mxu0 0.0
    %726 = vmatprep.subr.mxu0 0.0
    %727 = vmatpush1.msra.mxu0 0.0
    %728 = vmatprep.subr.mxu0 0.0
    %729 = vmatpush1.msra.mxu0 0.0
    %730 = vmatprep.subr.mxu0 0.0
    %731 = vmatpush1.msra.mxu0 0.0
    %732 = vmatprep.subr.mxu0 0.0
    %733 = vmatpush1.msra.mxu0 0.0
    %734 = vmatprep.subr.mxu0 0.0
    %735 = vmatpush1.msra.mxu0 0.0
    %736 = vmatprep.subr.mxu0 0.0
    %737 = vmatpush1.msra.mxu0 0.0
    %738 = vmatprep.mubr.f32.mxu0 0.0
    %739 = vmatmul.mubr.f32.gmra.mrb[0].mxu0 %v672
    %v740 = vpop.f32.mrb[0].mxu0
    %v741 = vadd.f32 %v669, %v740
    %v742 = vpop.f32.mrb[0].mxu0
    %743 = vdwg.mxu0
    %vm744 = vcmask 320512
    %v745 = vsel %vm744, %v741, -inf
    %746 = vmax.xlane.f32.xlu0 %v745
    %v747 = vpop.xlane.xlu0 %746
    %v748 = vsub.f32 %v741, %v747
    %v749 = vmul.f32 %v748, 1.442695
    %v750 = vpow.pop %v749
    %v751 = vsel %vm744, %v750, 0.0
    %752 = vadd.xlane.f32.xlu0 %v751
    %v753 = vpop.xlane.xlu0 %752
    %v754 = vlog2.pop %v753
    %v755 = vmul.f32 %v754, 0.6931472
    %v756 = vsub.f32 %v748, %v755
    %757 = vst.msk [vmem:[#allocation12] sm:$0x3] %vm744, %v756
    // Predicated region
    $region70: #{tpu_custom_call.1} parent=1 // pred_check
      %p758 = pneg %p89
    $region71: #{tpu_custom_call.1} parent=1 // pred_check_branch
      %760 = sbr.rel (%p758) target = $region73
    $region72: #{tpu_custom_call.1} parent=1 // pred_region
      %v761 = vld [vmem:[#allocation2] sm:$0x3]
      %v762 = vld [vmem:[#allocation2 + $0x2] sm:$0x3]
      %763 = vst.msk [vmem:[#allocation13] sm:$0x3] %vm247, %v761
      %764 = vst.msk [vmem:[#allocation13 + $0x2] sm:$0x3] %vm247, %v762
      %v765 = vld [vmem:[#allocation3] sm:$0x3]
      %v766 = vld [vmem:[#allocation3 + $0x2] sm:$0x3]
      %767 = vst.msk [vmem:[#allocation15] sm:$0x3] %vm247, %v765
      %768 = vst.msk [vmem:[#allocation15 + $0x2] sm:$0x3] %vm247, %v766
    $region73: #{tpu_custom_call.1} parent=1 // pred_fallthru
      _
    // Predicated region
    $region74: #{tpu_custom_call.1} parent=1 // pred_check
      _
    $region75: #{tpu_custom_call.1} parent=1 // pred_check_branch
      %770 = sbr.rel (0) target = $region77
    $region76: #{tpu_custom_call.1} parent=1 // pred_region
      %s772 = ssub.s32 32, 32
      %773 = vsyncadd [#allocation9], %s772
      %s775 = sshll.u32 [#allocation12], 4
      %s776 = int_to_ptr.vmem [resolvable:$true] %s775
      %778 = dma.vmem_to_hbm [thread:$0]  %s776, 32, %s15, [#allocation9]
    $region77: #{tpu_custom_call.1} parent=1 // pred_fallthru
      _
    // Predicated region
    $region78: #{tpu_custom_call.1} parent=1 // pred_check
      _
    $region79: #{tpu_custom_call.1} parent=1 // pred_check_branch
      %780 = sbr.rel (0) target = $region81
    $region80: #{tpu_custom_call.1} parent=1 // pred_region
      %s782 = ssub.s32 64, 64
      %783 = vsyncadd [#allocation14], %s782
      %s784 = sshll.u32 [#allocation13], 4
      %s785 = int_to_ptr.vmem [resolvable:$true] %s784
      %790 = dma.vmem_to_hbm [thread:$0]  %s785, 64, %s16, [#allocation14], 32, 32, 2
    $region81: #{tpu_custom_call.1} parent=1 // pred_fallthru
      _
    // Predicated region
    $region82: #{tpu_custom_call.1} parent=1 // pred_check
      _
    $region83: #{tpu_custom_call.1} parent=1 // pred_check_branch
      %792 = sbr.rel (0) target = $region85
    $region84: #{tpu_custom_call.1} parent=1 // pred_region
      %s794 = ssub.s32 64, 64
      %795 = vsyncadd [#allocation14], %s794
      %s796 = sshll.u32 [#allocation15], 4
      %s797 = int_to_ptr.vmem [resolvable:$true] %s796
      %802 = dma.vmem_to_hbm [thread:$0]  %s797, 64, %s17, [#allocation14], 32, 32, 2
    $region85: #{tpu_custom_call.1} parent=1 // pred_fallthru
      _
    // Predicated region
    $region86: #{tpu_custom_call.1} parent=1 // pred_check
      _
    $region87: #{tpu_custom_call.1} parent=1 // pred_check_branch
      %804 = sbr.rel (0) target = $region89
    $region88: #{tpu_custom_call.1} parent=1 // pred_region
      %s806 = ssub.s32 32, 32
      %807 = vsyncadd [#allocation17], %s806
      %s809 = sshll.u32 [#allocation16], 4
      %s810 = int_to_ptr.vmem [resolvable:$true] %s809
      %812 = dma.vmem_to_hbm [thread:$0]  %s810, 32, %s18, [#allocation17]
    $region89: #{tpu_custom_call.1} parent=1 // pred_fallthru
      _
    // Predicated region
    $region90: #{tpu_custom_call.1} parent=1 // pred_check
      _
    $region91: #{tpu_custom_call.1} parent=1 // pred_check_branch
      %814 = sbr.rel (0) target = $region93
    $region92: #{tpu_custom_call.1} parent=1 // pred_region
      %815 = dma.done [#allocation9], 32
    $region93: #{tpu_custom_call.1} parent=1 // pred_fallthru
      _
    // Predicated region
    $region94: #{tpu_custom_call.1} parent=1 // pred_check
      _
    $region95: #{tpu_custom_call.1} parent=1 // pred_check_branch
      %817 = sbr.rel (0) target = $region97
    $region96: #{tpu_custom_call.1} parent=1 // pred_region
      %818 = dma.done [#allocation14], 64
    $region97: #{tpu_custom_call.1} parent=1 // pred_fallthru
      _
    // Predicated region
    $region98: #{tpu_custom_call.1} parent=1 // pred_check
      _
    $region99: #{tpu_custom_call.1} parent=1 // pred_check_branch
      %820 = sbr.rel (0) target = $region101
    $region100: #{tpu_custom_call.1} parent=1 // pred_region
      %821 = dma.done [#allocation14], 64
    $region101: #{tpu_custom_call.1} parent=1 // pred_fallthru
      _
    // Predicated region
    $region102: #{tpu_custom_call.1} parent=1 // pred_check
      _
    $region103: #{tpu_custom_call.1} parent=1 // pred_check_branch
      %823 = sbr.rel (0) target = $region105
    $region104: #{tpu_custom_call.1} parent=1 // pred_region
      %824 = dma.done [#allocation17], 32
    $region105: #{tpu_custom_call.1} parent=1 // pred_fallthru
      _
    %825 = vsyncpa [#allocation8], 1
    %826 = vsyncpa [#allocation11], 1
    %827 = vsyncpa [#allocation9], 1
    %828 = vsyncpa [#allocation14], 1
    %829 = vsyncpa [#allocation17], 1

</llo_original>
